<compile_context>
chip_gen: v5e
topology: v5e:2x2
jax: 0.10.0
libtpu: 0.0.40
codegen_flags: <defaults>
</compile_context>

<pallas_src>
import jax
import jax.numpy as jnp
from jax.experimental import pallas as pl
from jax.experimental.pallas import tpu as pltpu

LANE = 128


def generate_kernel_sizes(input_size, N):
    """Port of generate_kernel_size: returns list of (out_c, in_c, kh, kw)."""
    c, d = input_size[0], input_size[1]
    sizes = [(1, c, 2, 2)]
    for _ in range(2, N):
        sizes.append((1, 1, 2, 2))
    k_last = int(d / 2 ** (N - 1))
    sizes.append((1, 1, k_last, k_last))
    return sizes


def sample_unit_kernel(key, size):
    """Port of sample_unit_kernel: uniform[0,1) kernel normalized by its sum."""
    k = jax.random.uniform(key, size, dtype=jnp.float32)
    return k / jnp.sum(k)


def _accumulate_taps(terms):
    """Sum tap terms via a few independent partial accumulators so the VALU
    is not serialized on a single dependent mul+add chain."""
    n_acc = min(4, len(terms))
    accs = [None] * n_acc
    for t, term in enumerate(terms):
        a = t % n_acc
        accs[a] = term if accs[a] is None else accs[a] + term
    out = accs[0]
    for a in accs[1:]:
        out = out + a
    return out


def make_slicer_kernel(C, H, W, conv_specs, n_convs):
    """conv_specs: list of (in_channels, kh, kw, dilation). Layout (C,H,W,Bt)."""

    def kernel(x_ref, *refs):
        w_refs = refs[:n_convs]
        o_ref = refs[n_convs]

        # ---- first conv: slice the input ref directly ----
        cin, kh, kw, dil = conv_specs[0]
        h, w = H, W
        oh = h - dil * (kh - 1)
        ow = w - dil * (kw - 1)
        terms = []
        for c in range(cin):
            for p in range(kh):
                for q in range(kw):
                    sl = x_ref[c,
                               p * dil:p * dil + oh,
                               q * dil:q * dil + ow,
                               :].astype(jnp.float32)
                    terms.append(sl * w_refs[0][c * kh * kw + p * kw + q])
        cur = _accumulate_taps(terms)     # (oh, ow, Bt)
        h, w = oh, ow

        # ---- remaining convs: single input channel ----
        # TODO(synk): if the final dense kernel grows past ~8x8 (larger D or
        # smaller N), switch it to an im2col matmul with weights in VMEM
        # instead of a fully unrolled SMEM-scalar tap loop.
        for (_, kh, kw, dil), w_ref in zip(conv_specs[1:], w_refs[1:]):
            oh = h - dil * (kh - 1)
            ow = w - dil * (kw - 1)
            terms = []
            for p in range(kh):
                for q in range(kw):
                    sl = cur[p * dil:p * dil + oh, q * dil:q * dil + ow, :]
                    terms.append(sl * w_ref[p * kw + q])
            cur = _accumulate_taps(terms)
            h, w = oh, ow

        o_ref[...] = cur.astype(o_ref.dtype)

    return kernel


def conv_dilatation_slicer(x, kernels):
    """x: (B, C, H, W) float32.  kernels: list of (1, cin, kh, kw) arrays."""
    B, C, H, W = x.shape
    N = len(kernels)
    dilations = [3] * (N - 1) + [1]

    conv_specs = []
    h, w = H, W
    for k, dil in zip(kernels, dilations):
        _, cin, kh, kw = k.shape
        conv_specs.append((cin, kh, kw, dil))
        h = h - dil * (kh - 1)
        w = w - dil * (kw - 1)
    Ho, Wo = h, w

    # ---- batch tiling: batch on the lane axis, many images per grid step ----
    bytes_per_image = C * H * W * 4
    # Keep double-buffered input comfortably inside v7x's 64 MiB VMEM per TC.
    vmem_budget = 16 * 1024 * 1024
    max_bt = max(LANE, ((vmem_budget // (2 * bytes_per_image)) // LANE) * LANE)
    Bt = min(max_bt, pl.cdiv(B, LANE) * LANE)
    B_pad = pl.cdiv(B, Bt) * Bt
    n_blocks = B_pad // Bt

    # (B, C, H, W) -> (C, H, W, B_pad): batch becomes the dense lane axis.
    x_t = jnp.transpose(x, (1, 2, 3, 0))
    if B_pad != B:
        x_t = jnp.pad(x_t, ((0, 0), (0, 0), (0, 0), (0, B_pad - B)))

    # Flatten each tiny weight to 1D for cheap scalar reads from SMEM.
    ws_flat = [k.reshape(-1).astype(jnp.float32) for k in kernels]

    kernel_fn = make_slicer_kernel(C, H, W, conv_specs, N)

    out_t = pl.pallas_call(
        kernel_fn,
        out_shape=jax.ShapeDtypeStruct((Ho, Wo, B_pad), x.dtype),
        grid=(n_blocks,),
        in_specs=[pl.BlockSpec((C, H, W, Bt), lambda b: (0, 0, 0, b))]
        + [pl.BlockSpec(memory_space=pltpu.MemorySpace.SMEM)] * N,
        out_specs=pl.BlockSpec((Ho, Wo, Bt), lambda b: (0, 0, b)),
        compiler_params=pltpu.CompilerParams(
            dimension_semantics=("parallel",)),
    )(x_t, *ws_flat)

    # (Ho, Wo, B_pad) -> (B, 1, Ho, Wo), dropping batch padding.
    out = jnp.transpose(out_t[:, :, :B], (2, 0, 1))[:, None, :, :]
    return out


def reference_forward(x, kernels):
    """Pure-JAX reference matching F.conv2d(NCHW, OIHW)."""
    N = len(kernels)
    dilations = [3] * (N - 1) + [1]
    for k, dil in zip(kernels, dilations):
        x = jax.lax.conv_general_dilated(
            x, k, window_strides=(1, 1), padding="VALID",
            rhs_dilation=(dil, dil),
            dimension_numbers=("NCHW", "OIHW", "NCHW"))
    return x


if __name__ == "__main__":
    # Small shapes: batch=2, channels=4, spatial=16, N=3 kernels.
    B, C, D = 2, 4, 16
    N = 3
    input_size = (C, D, D)

    key = jax.random.PRNGKey(0)
    key, xk = jax.random.split(key)
    x = jax.random.normal(xk, (B, C, D, D), dtype=jnp.float32)

    sizes = generate_kernel_sizes(input_size, N)
    wkeys = jax.random.split(key, N)
    kernels = [sample_unit_kernel(k, s) for k, s in zip(wkeys, sizes)]

    out = conv_dilatation_slicer(x, kernels)
    out = jax.block_until_ready(out)

    ref = jax.block_until_ready(reference_forward(x, kernels))
    assert out.shape == ref.shape, (out.shape, ref.shape)
    assert jnp.allclose(out, ref, atol=1e-5, rtol=1e-5), float(
        jnp.max(jnp.abs(out - ref)))

    print("KERNEL_OK")
</pallas_src>

<mosaic_0001>
module attributes {stable_mosaic.version = 11 : i64} {
  func.func @kernel(%arg0: i32, %arg1: memref<4x16x16x128xf32, #tpu.memory_space<vmem>>, %arg2: memref<16xf32, #tpu.memory_space<smem>>, %arg3: memref<4xf32, #tpu.memory_space<smem>>, %arg4: memref<16xf32, #tpu.memory_space<smem>>, %arg5: memref<7x7x128xf32, #tpu.memory_space<vmem>>) attributes {dimension_semantics = [#tpu.dimension_semantics<parallel>], iteration_bounds = array<i64: 1>, scalar_prefetch = 0 : i64, scratch_operands = 0 : i64, tpu.core_type = #tpu.core_type<tc>, window_params = [{transform_indices = @transform_0, window_bounds = array<i64: 4, 16, 16, 128>}, {transform_indices = @transform_1, window_bounds = array<i64: 16>}, {transform_indices = @transform_2, window_bounds = array<i64: 4>}, {transform_indices = @transform_3, window_bounds = array<i64: 16>}, {transform_indices = @transform_4, window_bounds = array<i64: 7, 7, 128>}]} {
    %c0 = arith.constant 0 : index
    %c0_0 = arith.constant 0 : index
    %c0_1 = arith.constant 0 : index
    %c0_2 = arith.constant 0 : index
    %0 = vector.load %arg1[%c0, %c0_0, %c0_1, %c0_2] : memref<4x16x16x128xf32, #tpu.memory_space<vmem>>, vector<1x13x13x128xf32>
    %1 = vector.shape_cast %0 : vector<1x13x13x128xf32> to vector<13x13x128xf32>
    %c0_3 = arith.constant 0 : index
    %2 = memref.load %arg2[%c0_3] : memref<16xf32, #tpu.memory_space<smem>>
    %3 = vector.broadcast %2 : f32 to vector<13x13x128xf32>
    %4 = arith.mulf %1, %3 : vector<13x13x128xf32>
    %c0_4 = arith.constant 0 : index
    %c0_5 = arith.constant 0 : index
    %c3 = arith.constant 3 : index
    %c0_6 = arith.constant 0 : index
    %5 = vector.load %arg1[%c0_4, %c0_5, %c3, %c0_6] : memref<4x16x16x128xf32, #tpu.memory_space<vmem>>, vector<1x13x13x128xf32>
    %6 = vector.shape_cast %5 : vector<1x13x13x128xf32> to vector<13x13x128xf32>
    %c1 = arith.constant 1 : index
    %7 = memref.load %arg2[%c1] : memref<16xf32, #tpu.memory_space<smem>>
    %8 = vector.broadcast %7 : f32 to vector<13x13x128xf32>
    %9 = arith.mulf %6, %8 : vector<13x13x128xf32>
    %c0_7 = arith.constant 0 : index
    %c3_8 = arith.constant 3 : index
    %c0_9 = arith.constant 0 : index
    %c0_10 = arith.constant 0 : index
    %10 = vector.load %arg1[%c0_7, %c3_8, %c0_9, %c0_10] : memref<4x16x16x128xf32, #tpu.memory_space<vmem>>, vector<1x13x13x128xf32>
    %11 = vector.shape_cast %10 : vector<1x13x13x128xf32> to vector<13x13x128xf32>
    %c2 = arith.constant 2 : index
    %12 = memref.load %arg2[%c2] : memref<16xf32, #tpu.memory_space<smem>>
    %13 = vector.broadcast %12 : f32 to vector<13x13x128xf32>
    %14 = arith.mulf %11, %13 : vector<13x13x128xf32>
    %c0_11 = arith.constant 0 : index
    %c3_12 = arith.constant 3 : index
    %c3_13 = arith.constant 3 : index
    %c0_14 = arith.constant 0 : index
    %15 = vector.load %arg1[%c0_11, %c3_12, %c3_13, %c0_14] : memref<4x16x16x128xf32, #tpu.memory_space<vmem>>, vector<1x13x13x128xf32>
    %16 = vector.shape_cast %15 : vector<1x13x13x128xf32> to vector<13x13x128xf32>
    %c3_15 = arith.constant 3 : index
    %17 = memref.load %arg2[%c3_15] : memref<16xf32, #tpu.memory_space<smem>>
    %18 = vector.broadcast %17 : f32 to vector<13x13x128xf32>
    %19 = arith.mulf %16, %18 : vector<13x13x128xf32>
    %c1_16 = arith.constant 1 : index
    %c0_17 = arith.constant 0 : index
    %c0_18 = arith.constant 0 : index
    %c0_19 = arith.constant 0 : index
    %20 = vector.load %arg1[%c1_16, %c0_17, %c0_18, %c0_19] : memref<4x16x16x128xf32, #tpu.memory_space<vmem>>, vector<1x13x13x128xf32>
    %21 = vector.shape_cast %20 : vector<1x13x13x128xf32> to vector<13x13x128xf32>
    %c4 = arith.constant 4 : index
    %22 = memref.load %arg2[%c4] : memref<16xf32, #tpu.memory_space<smem>>
    %23 = vector.broadcast %22 : f32 to vector<13x13x128xf32>
    %24 = arith.mulf %21, %23 : vector<13x13x128xf32>
    %c1_20 = arith.constant 1 : index
    %c0_21 = arith.constant 0 : index
    %c3_22 = arith.constant 3 : index
    %c0_23 = arith.constant 0 : index
    %25 = vector.load %arg1[%c1_20, %c0_21, %c3_22, %c0_23] : memref<4x16x16x128xf32, #tpu.memory_space<vmem>>, vector<1x13x13x128xf32>
    %26 = vector.shape_cast %25 : vector<1x13x13x128xf32> to vector<13x13x128xf32>
    %c5 = arith.constant 5 : index
    %27 = memref.load %arg2[%c5] : memref<16xf32, #tpu.memory_space<smem>>
    %28 = vector.broadcast %27 : f32 to vector<13x13x128xf32>
    %29 = arith.mulf %26, %28 : vector<13x13x128xf32>
    %c1_24 = arith.constant 1 : index
    %c3_25 = arith.constant 3 : index
    %c0_26 = arith.constant 0 : index
    %c0_27 = arith.constant 0 : index
    %30 = vector.load %arg1[%c1_24, %c3_25, %c0_26, %c0_27] : memref<4x16x16x128xf32, #tpu.memory_space<vmem>>, vector<1x13x13x128xf32>
    %31 = vector.shape_cast %30 : vector<1x13x13x128xf32> to vector<13x13x128xf32>
    %c6 = arith.constant 6 : index
    %32 = memref.load %arg2[%c6] : memref<16xf32, #tpu.memory_space<smem>>
    %33 = vector.broadcast %32 : f32 to vector<13x13x128xf32>
    %34 = arith.mulf %31, %33 : vector<13x13x128xf32>
    %c1_28 = arith.constant 1 : index
    %c3_29 = arith.constant 3 : index
    %c3_30 = arith.constant 3 : index
    %c0_31 = arith.constant 0 : index
    %35 = vector.load %arg1[%c1_28, %c3_29, %c3_30, %c0_31] : memref<4x16x16x128xf32, #tpu.memory_space<vmem>>, vector<1x13x13x128xf32>
    %36 = vector.shape_cast %35 : vector<1x13x13x128xf32> to vector<13x13x128xf32>
    %c7 = arith.constant 7 : index
    %37 = memref.load %arg2[%c7] : memref<16xf32, #tpu.memory_space<smem>>
    %38 = vector.broadcast %37 : f32 to vector<13x13x128xf32>
    %39 = arith.mulf %36, %38 : vector<13x13x128xf32>
    %c2_32 = arith.constant 2 : index
    %c0_33 = arith.constant 0 : index
    %c0_34 = arith.constant 0 : index
    %c0_35 = arith.constant 0 : index
    %40 = vector.load %arg1[%c2_32, %c0_33, %c0_34, %c0_35] : memref<4x16x16x128xf32, #tpu.memory_space<vmem>>, vector<1x13x13x128xf32>
    %41 = vector.shape_cast %40 : vector<1x13x13x128xf32> to vector<13x13x128xf32>
    %c8 = arith.constant 8 : index
    %42 = memref.load %arg2[%c8] : memref<16xf32, #tpu.memory_space<smem>>
    %43 = vector.broadcast %42 : f32 to vector<13x13x128xf32>
    %44 = arith.mulf %41, %43 : vector<13x13x128xf32>
    %c2_36 = arith.constant 2 : index
    %c0_37 = arith.constant 0 : index
    %c3_38 = arith.constant 3 : index
    %c0_39 = arith.constant 0 : index
    %45 = vector.load %arg1[%c2_36, %c0_37, %c3_38, %c0_39] : memref<4x16x16x128xf32, #tpu.memory_space<vmem>>, vector<1x13x13x128xf32>
    %46 = vector.shape_cast %45 : vector<1x13x13x128xf32> to vector<13x13x128xf32>
    %c9 = arith.constant 9 : index
    %47 = memref.load %arg2[%c9] : memref<16xf32, #tpu.memory_space<smem>>
    %48 = vector.broadcast %47 : f32 to vector<13x13x128xf32>
    %49 = arith.mulf %46, %48 : vector<13x13x128xf32>
    %c2_40 = arith.constant 2 : index
    %c3_41 = arith.constant 3 : index
    %c0_42 = arith.constant 0 : index
    %c0_43 = arith.constant 0 : index
    %50 = vector.load %arg1[%c2_40, %c3_41, %c0_42, %c0_43] : memref<4x16x16x128xf32, #tpu.memory_space<vmem>>, vector<1x13x13x128xf32>
    %51 = vector.shape_cast %50 : vector<1x13x13x128xf32> to vector<13x13x128xf32>
    %c10 = arith.constant 10 : index
    %52 = memref.load %arg2[%c10] : memref<16xf32, #tpu.memory_space<smem>>
    %53 = vector.broadcast %52 : f32 to vector<13x13x128xf32>
    %54 = arith.mulf %51, %53 : vector<13x13x128xf32>
    %c2_44 = arith.constant 2 : index
    %c3_45 = arith.constant 3 : index
    %c3_46 = arith.constant 3 : index
    %c0_47 = arith.constant 0 : index
    %55 = vector.load %arg1[%c2_44, %c3_45, %c3_46, %c0_47] : memref<4x16x16x128xf32, #tpu.memory_space<vmem>>, vector<1x13x13x128xf32>
    %56 = vector.shape_cast %55 : vector<1x13x13x128xf32> to vector<13x13x128xf32>
    %c11 = arith.constant 11 : index
    %57 = memref.load %arg2[%c11] : memref<16xf32, #tpu.memory_space<smem>>
    %58 = vector.broadcast %57 : f32 to vector<13x13x128xf32>
    %59 = arith.mulf %56, %58 : vector<13x13x128xf32>
    %c3_48 = arith.constant 3 : index
    %c0_49 = arith.constant 0 : index
    %c0_50 = arith.constant 0 : index
    %c0_51 = arith.constant 0 : index
    %60 = vector.load %arg1[%c3_48, %c0_49, %c0_50, %c0_51] : memref<4x16x16x128xf32, #tpu.memory_space<vmem>>, vector<1x13x13x128xf32>
    %61 = vector.shape_cast %60 : vector<1x13x13x128xf32> to vector<13x13x128xf32>
    %c12 = arith.constant 12 : index
    %62 = memref.load %arg2[%c12] : memref<16xf32, #tpu.memory_space<smem>>
    %63 = vector.broadcast %62 : f32 to vector<13x13x128xf32>
    %64 = arith.mulf %61, %63 : vector<13x13x128xf32>
    %c3_52 = arith.constant 3 : index
    %c0_53 = arith.constant 0 : index
    %c3_54 = arith.constant 3 : index
    %c0_55 = arith.constant 0 : index
    %65 = vector.load %arg1[%c3_52, %c0_53, %c3_54, %c0_55] : memref<4x16x16x128xf32, #tpu.memory_space<vmem>>, vector<1x13x13x128xf32>
    %66 = vector.shape_cast %65 : vector<1x13x13x128xf32> to vector<13x13x128xf32>
    %c13 = arith.constant 13 : index
    %67 = memref.load %arg2[%c13] : memref<16xf32, #tpu.memory_space<smem>>
    %68 = vector.broadcast %67 : f32 to vector<13x13x128xf32>
    %69 = arith.mulf %66, %68 : vector<13x13x128xf32>
    %c3_56 = arith.constant 3 : index
    %c3_57 = arith.constant 3 : index
    %c0_58 = arith.constant 0 : index
    %c0_59 = arith.constant 0 : index
    %70 = vector.load %arg1[%c3_56, %c3_57, %c0_58, %c0_59] : memref<4x16x16x128xf32, #tpu.memory_space<vmem>>, vector<1x13x13x128xf32>
    %71 = vector.shape_cast %70 : vector<1x13x13x128xf32> to vector<13x13x128xf32>
    %c14 = arith.constant 14 : index
    %72 = memref.load %arg2[%c14] : memref<16xf32, #tpu.memory_space<smem>>
    %73 = vector.broadcast %72 : f32 to vector<13x13x128xf32>
    %74 = arith.mulf %71, %73 : vector<13x13x128xf32>
    %c3_60 = arith.constant 3 : index
    %c3_61 = arith.constant 3 : index
    %c3_62 = arith.constant 3 : index
    %c0_63 = arith.constant 0 : index
    %75 = vector.load %arg1[%c3_60, %c3_61, %c3_62, %c0_63] : memref<4x16x16x128xf32, #tpu.memory_space<vmem>>, vector<1x13x13x128xf32>
    %76 = vector.shape_cast %75 : vector<1x13x13x128xf32> to vector<13x13x128xf32>
    %c15 = arith.constant 15 : index
    %77 = memref.load %arg2[%c15] : memref<16xf32, #tpu.memory_space<smem>>
    %78 = vector.broadcast %77 : f32 to vector<13x13x128xf32>
    %79 = arith.mulf %76, %78 : vector<13x13x128xf32>
    %80 = arith.addf %4, %24 : vector<13x13x128xf32>
    %81 = arith.addf %9, %29 : vector<13x13x128xf32>
    %82 = arith.addf %14, %34 : vector<13x13x128xf32>
    %83 = arith.addf %19, %39 : vector<13x13x128xf32>
    %84 = arith.addf %80, %44 : vector<13x13x128xf32>
    %85 = arith.addf %81, %49 : vector<13x13x128xf32>
    %86 = arith.addf %82, %54 : vector<13x13x128xf32>
    %87 = arith.addf %83, %59 : vector<13x13x128xf32>
    %88 = arith.addf %84, %64 : vector<13x13x128xf32>
    %89 = arith.addf %85, %69 : vector<13x13x128xf32>
    %90 = arith.addf %86, %74 : vector<13x13x128xf32>
    %91 = arith.addf %87, %79 : vector<13x13x128xf32>
    %92 = arith.addf %88, %89 : vector<13x13x128xf32>
    %93 = arith.addf %92, %90 : vector<13x13x128xf32>
    %94 = arith.addf %93, %91 : vector<13x13x128xf32>
    %95 = vector.extract_strided_slice %94 {offsets = [0, 0, 0], sizes = [10, 10, 128], strides = [1, 1, 1]} : vector<13x13x128xf32> to vector<10x10x128xf32>
    %c0_64 = arith.constant 0 : index
    %96 = memref.load %arg3[%c0_64] : memref<4xf32, #tpu.memory_space<smem>>
    %97 = vector.broadcast %96 : f32 to vector<10x10x128xf32>
    %98 = arith.mulf %95, %97 : vector<10x10x128xf32>
    %99 = vector.extract_strided_slice %94 {offsets = [0, 3, 0], sizes = [10, 10, 128], strides = [1, 1, 1]} : vector<13x13x128xf32> to vector<10x10x128xf32>
    %c1_65 = arith.constant 1 : index
    %100 = memref.load %arg3[%c1_65] : memref<4xf32, #tpu.memory_space<smem>>
    %101 = vector.broadcast %100 : f32 to vector<10x10x128xf32>
    %102 = arith.mulf %99, %101 : vector<10x10x128xf32>
    %103 = vector.extract_strided_slice %94 {offsets = [3, 0, 0], sizes = [10, 10, 128], strides = [1, 1, 1]} : vector<13x13x128xf32> to vector<10x10x128xf32>
    %c2_66 = arith.constant 2 : index
    %104 = memref.load %arg3[%c2_66] : memref<4xf32, #tpu.memory_space<smem>>
    %105 = vector.broadcast %104 : f32 to vector<10x10x128xf32>
    %106 = arith.mulf %103, %105 : vector<10x10x128xf32>
    %107 = vector.extract_strided_slice %94 {offsets = [3, 3, 0], sizes = [10, 10, 128], strides = [1, 1, 1]} : vector<13x13x128xf32> to vector<10x10x128xf32>
    %c3_67 = arith.constant 3 : index
    %108 = memref.load %arg3[%c3_67] : memref<4xf32, #tpu.memory_space<smem>>
    %109 = vector.broadcast %108 : f32 to vector<10x10x128xf32>
    %110 = arith.mulf %107, %109 : vector<10x10x128xf32>
    %111 = arith.addf %98, %102 : vector<10x10x128xf32>
    %112 = arith.addf %111, %106 : vector<10x10x128xf32>
    %113 = arith.addf %112, %110 : vector<10x10x128xf32>
    %114 = vector.extract_strided_slice %113 {offsets = [0, 0, 0], sizes = [7, 7, 128], strides = [1, 1, 1]} : vector<10x10x128xf32> to vector<7x7x128xf32>
    %c0_68 = arith.constant 0 : index
    %115 = memref.load %arg4[%c0_68] : memref<16xf32, #tpu.memory_space<smem>>
    %116 = vector.broadcast %115 : f32 to vector<7x7x128xf32>
    %117 = arith.mulf %114, %116 : vector<7x7x128xf32>
    %118 = vector.extract_strided_slice %113 {offsets = [0, 1, 0], sizes = [7, 7, 128], strides = [1, 1, 1]} : vector<10x10x128xf32> to vector<7x7x128xf32>
    %c1_69 = arith.constant 1 : index
    %119 = memref.load %arg4[%c1_69] : memref<16xf32, #tpu.memory_space<smem>>
    %120 = vector.broadcast %119 : f32 to vector<7x7x128xf32>
    %121 = arith.mulf %118, %120 : vector<7x7x128xf32>
    %122 = vector.extract_strided_slice %113 {offsets = [0, 2, 0], sizes = [7, 7, 128], strides = [1, 1, 1]} : vector<10x10x128xf32> to vector<7x7x128xf32>
    %c2_70 = arith.constant 2 : index
    %123 = memref.load %arg4[%c2_70] : memref<16xf32, #tpu.memory_space<smem>>
    %124 = vector.broadcast %123 : f32 to vector<7x7x128xf32>
    %125 = arith.mulf %122, %124 : vector<7x7x128xf32>
    %126 = vector.extract_strided_slice %113 {offsets = [0, 3, 0], sizes = [7, 7, 128], strides = [1, 1, 1]} : vector<10x10x128xf32> to vector<7x7x128xf32>
    %c3_71 = arith.constant 3 : index
    %127 = memref.load %arg4[%c3_71] : memref<16xf32, #tpu.memory_space<smem>>
    %128 = vector.broadcast %127 : f32 to vector<7x7x128xf32>
    %129 = arith.mulf %126, %128 : vector<7x7x128xf32>
    %130 = vector.extract_strided_slice %113 {offsets = [1, 0, 0], sizes = [7, 7, 128], strides = [1, 1, 1]} : vector<10x10x128xf32> to vector<7x7x128xf32>
    %c4_72 = arith.constant 4 : index
    %131 = memref.load %arg4[%c4_72] : memref<16xf32, #tpu.memory_space<smem>>
    %132 = vector.broadcast %131 : f32 to vector<7x7x128xf32>
    %133 = arith.mulf %130, %132 : vector<7x7x128xf32>
    %134 = vector.extract_strided_slice %113 {offsets = [1, 1, 0], sizes = [7, 7, 128], strides = [1, 1, 1]} : vector<10x10x128xf32> to vector<7x7x128xf32>
    %c5_73 = arith.constant 5 : index
    %135 = memref.load %arg4[%c5_73] : memref<16xf32, #tpu.memory_space<smem>>
    %136 = vector.broadcast %135 : f32 to vector<7x7x128xf32>
    %137 = arith.mulf %134, %136 : vector<7x7x128xf32>
    %138 = vector.extract_strided_slice %113 {offsets = [1, 2, 0], sizes = [7, 7, 128], strides = [1, 1, 1]} : vector<10x10x128xf32> to vector<7x7x128xf32>
    %c6_74 = arith.constant 6 : index
    %139 = memref.load %arg4[%c6_74] : memref<16xf32, #tpu.memory_space<smem>>
    %140 = vector.broadcast %139 : f32 to vector<7x7x128xf32>
    %141 = arith.mulf %138, %140 : vector<7x7x128xf32>
    %142 = vector.extract_strided_slice %113 {offsets = [1, 3, 0], sizes = [7, 7, 128], strides = [1, 1, 1]} : vector<10x10x128xf32> to vector<7x7x128xf32>
    %c7_75 = arith.constant 7 : index
    %143 = memref.load %arg4[%c7_75] : memref<16xf32, #tpu.memory_space<smem>>
    %144 = vector.broadcast %143 : f32 to vector<7x7x128xf32>
    %145 = arith.mulf %142, %144 : vector<7x7x128xf32>
    %146 = vector.extract_strided_slice %113 {offsets = [2, 0, 0], sizes = [7, 7, 128], strides = [1, 1, 1]} : vector<10x10x128xf32> to vector<7x7x128xf32>
    %c8_76 = arith.constant 8 : index
    %147 = memref.load %arg4[%c8_76] : memref<16xf32, #tpu.memory_space<smem>>
    %148 = vector.broadcast %147 : f32 to vector<7x7x128xf32>
    %149 = arith.mulf %146, %148 : vector<7x7x128xf32>
    %150 = vector.extract_strided_slice %113 {offsets = [2, 1, 0], sizes = [7, 7, 128], strides = [1, 1, 1]} : vector<10x10x128xf32> to vector<7x7x128xf32>
    %c9_77 = arith.constant 9 : index
    %151 = memref.load %arg4[%c9_77] : memref<16xf32, #tpu.memory_space<smem>>
    %152 = vector.broadcast %151 : f32 to vector<7x7x128xf32>
    %153 = arith.mulf %150, %152 : vector<7x7x128xf32>
    %154 = vector.extract_strided_slice %113 {offsets = [2, 2, 0], sizes = [7, 7, 128], strides = [1, 1, 1]} : vector<10x10x128xf32> to vector<7x7x128xf32>
    %c10_78 = arith.constant 10 : index
    %155 = memref.load %arg4[%c10_78] : memref<16xf32, #tpu.memory_space<smem>>
    %156 = vector.broadcast %155 : f32 to vector<7x7x128xf32>
    %157 = arith.mulf %154, %156 : vector<7x7x128xf32>
    %158 = vector.extract_strided_slice %113 {offsets = [2, 3, 0], sizes = [7, 7, 128], strides = [1, 1, 1]} : vector<10x10x128xf32> to vector<7x7x128xf32>
    %c11_79 = arith.constant 11 : index
    %159 = memref.load %arg4[%c11_79] : memref<16xf32, #tpu.memory_space<smem>>
    %160 = vector.broadcast %159 : f32 to vector<7x7x128xf32>
    %161 = arith.mulf %158, %160 : vector<7x7x128xf32>
    %162 = vector.extract_strided_slice %113 {offsets = [3, 0, 0], sizes = [7, 7, 128], strides = [1, 1, 1]} : vector<10x10x128xf32> to vector<7x7x128xf32>
    %c12_80 = arith.constant 12 : index
    %163 = memref.load %arg4[%c12_80] : memref<16xf32, #tpu.memory_space<smem>>
    %164 = vector.broadcast %163 : f32 to vector<7x7x128xf32>
    %165 = arith.mulf %162, %164 : vector<7x7x128xf32>
    %166 = vector.extract_strided_slice %113 {offsets = [3, 1, 0], sizes = [7, 7, 128], strides = [1, 1, 1]} : vector<10x10x128xf32> to vector<7x7x128xf32>
    %c13_81 = arith.constant 13 : index
    %167 = memref.load %arg4[%c13_81] : memref<16xf32, #tpu.memory_space<smem>>
    %168 = vector.broadcast %167 : f32 to vector<7x7x128xf32>
    %169 = arith.mulf %166, %168 : vector<7x7x128xf32>
    %170 = vector.extract_strided_slice %113 {offsets = [3, 2, 0], sizes = [7, 7, 128], strides = [1, 1, 1]} : vector<10x10x128xf32> to vector<7x7x128xf32>
    %c14_82 = arith.constant 14 : index
    %171 = memref.load %arg4[%c14_82] : memref<16xf32, #tpu.memory_space<smem>>
    %172 = vector.broadcast %171 : f32 to vector<7x7x128xf32>
    %173 = arith.mulf %170, %172 : vector<7x7x128xf32>
    %174 = vector.extract_strided_slice %113 {offsets = [3, 3, 0], sizes = [7, 7, 128], strides = [1, 1, 1]} : vector<10x10x128xf32> to vector<7x7x128xf32>
    %c15_83 = arith.constant 15 : index
    %175 = memref.load %arg4[%c15_83] : memref<16xf32, #tpu.memory_space<smem>>
    %176 = vector.broadcast %175 : f32 to vector<7x7x128xf32>
    %177 = arith.mulf %174, %176 : vector<7x7x128xf32>
    %178 = arith.addf %117, %133 : vector<7x7x128xf32>
    %179 = arith.addf %121, %137 : vector<7x7x128xf32>
    %180 = arith.addf %125, %141 : vector<7x7x128xf32>
    %181 = arith.addf %129, %145 : vector<7x7x128xf32>
    %182 = arith.addf %178, %149 : vector<7x7x128xf32>
    %183 = arith.addf %179, %153 : vector<7x7x128xf32>
    %184 = arith.addf %180, %157 : vector<7x7x128xf32>
    %185 = arith.addf %181, %161 : vector<7x7x128xf32>
    %186 = arith.addf %182, %165 : vector<7x7x128xf32>
    %187 = arith.addf %183, %169 : vector<7x7x128xf32>
    %188 = arith.addf %184, %173 : vector<7x7x128xf32>
    %189 = arith.addf %185, %177 : vector<7x7x128xf32>
    %190 = arith.addf %186, %187 : vector<7x7x128xf32>
    %191 = arith.addf %190, %188 : vector<7x7x128xf32>
    %192 = arith.addf %191, %189 : vector<7x7x128xf32>
    %c0_84 = arith.constant 0 : index
    %c0_85 = arith.constant 0 : index
    %c0_86 = arith.constant 0 : index
    %193 = vector.load %arg5[%c0_84, %c0_85, %c0_86] : memref<7x7x128xf32, #tpu.memory_space<vmem>>, vector<7x7x128xf32>
    tpu.vector_store %arg5[%c0_84, %c0_85, %c0_86], %192 {strides = array<i32>} : memref<7x7x128xf32, #tpu.memory_space<vmem>>, vector<7x7x128xf32>,
    return
  }
  func.func @transform_0(%arg0: i32) -> (i32, i32, i32, i32) {
    %c0_i32 = arith.constant 0 : i32
    %c0_i32_0 = arith.constant 0 : i32
    %c0_i32_1 = arith.constant 0 : i32
    %c0_i32_2 = arith.constant 0 : i32
    return %c0_i32, %c0_i32_0, %c0_i32_1, %arg0 : i32, i32, i32, i32
  }
  func.func @transform_1(%arg0: i32) -> i32 {
    %c0_i32 = arith.constant 0 : i32
    %c0_i32_0 = arith.constant 0 : i32
    return %c0_i32 : i32
  }
  func.func @transform_2(%arg0: i32) -> i32 {
    %c0_i32 = arith.constant 0 : i32
    %c0_i32_0 = arith.constant 0 : i32
    return %c0_i32 : i32
  }
  func.func @transform_3(%arg0: i32) -> i32 {
    %c0_i32 = arith.constant 0 : i32
    %c0_i32_0 = arith.constant 0 : i32
    return %c0_i32 : i32
  }
  func.func @transform_4(%arg0: i32) -> (i32, i32, i32) {
    %c0_i32 = arith.constant 0 : i32
    %c0_i32_0 = arith.constant 0 : i32
    %c0_i32_1 = arith.constant 0 : i32
    return %c0_i32, %c0_i32_0, %arg0 : i32, i32, i32
  }
}

</mosaic_0001>

<llo_original>
// kernel: tpu_custom_call.1
$region0: #{tpu_custom_call.1}
  #allocation0 [shape = 'u32[]', space=smem, size = 0x4, offset = 0x4, fixed_abs, tag = 'smem constant byte address 0x4 - core index']
  #allocation1 [shape = 'u32[72,128]{1,0:T(1,128)}', space=vmem, size = 0x9000, scoped, tag = 'internal scratch']
  %s0 = inlined_call_operand.hbm [shape: f32[4,16,16,128], index: 0, kind: input, shape index: {}]
  %s1 = inlined_call_operand.hbm [shape: f32[16], index: 1, kind: input, shape index: {}]
  %s2 = inlined_call_operand.vmem [shape: f32[4], index: 2, kind: input, shape index: {}]
  %s3 = inlined_call_operand.vmem [shape: f32[16], index: 3, kind: input, shape index: {}]
  %s4 = inlined_call_operand.hbm [shape: f32[7,7,128], index: 4, kind: output, shape index: {}]
  %s5 = sld [smem:[#allocation0]]
  $region42: #{tpu_custom_call.1} parent=0
    _
  %s7 = ssub.s32 1, %s5
  %s8 = scalar_select 0, %s7, %s5
  $region1: #{tpu_custom_call.1} parent=0
    #allocation2 [shape = 'u8[524288]{0}', space=vmem, size = 0x80000, scoped, tag = 'input window, operand 0, single buffered']
    #allocation3 [shape = 's32[1]{0}', space=sflag, size = 0x4, scoped, tag = 'scoped memory for tpu_custom_call.1']
    #allocation4 [shape = 's32[1]{0}', space=sflag, size = 0x4, scoped, tag = 'scoped memory for tpu_custom_call.1']
    #allocation5 [shape = 's32[1]{0}', space=sflag, size = 0x4, scoped, tag = 'scoped memory for tpu_custom_call.1']
    #allocation6 [shape = 's32[1]{0}', space=sflag, size = 0x4, scoped, tag = 'scoped memory for tpu_custom_call.1']
    #allocation7 [shape = 'u8[512]{0}', space=smem, size = 0x200, scoped, tag = 'input window, operand 1, single buffered']
    #allocation8 [shape = 'u8[512]{0}', space=smem, size = 0x200, scoped, tag = 'input window, operand 2, single buffered']
    #allocation9 [shape = 'u8[512]{0}', space=smem, size = 0x200, scoped, tag = 'input window, operand 3, single buffered']
    #allocation10 [shape = 's32[1]{0}', space=sflag, size = 0x4, scoped, tag = 'scoped memory for tpu_custom_call.1']
    #allocation11 [shape = 'u8[28672]{0}', space=vmem, size = 0x7000, scoped, tag = 'output window, operand 0, single buffered']
    %9 = vsyncpa [#allocation3], 0
    %10 = vsyncpa [#allocation5], 0
    %11 = vsyncpa [#allocation6], 0
    %12 = vsyncpa [#allocation10], 0
    %13 = vsyncpa [#allocation4], 0
    // Predicated region
    $region2: #{tpu_custom_call.1} parent=1 // pred_check
      _
    $region3: #{tpu_custom_call.1} parent=1 // pred_check_branch
      %15 = sbr.rel (0) target = $region5
    $region4: #{tpu_custom_call.1} parent=1 // pred_region
      %17 = vsyncadd [#allocation3], 0
      %s18 = sshll.u32 %s0, 4
      %s19 = int_to_ptr.hbm [resolvable:$true] %s18
      %s20 = sshll.u32 [#allocation2], 4
      %s21 = int_to_ptr.vmem [resolvable:$true] %s20
      %26 = dma.hbm_to_vmem [thread:$0]  %s19, 16384, %s21, [#allocation3], 128, 128, 8
    $region5: #{tpu_custom_call.1} parent=1 // pred_fallthru
      _
    // Predicated region
    $region6: #{tpu_custom_call.1} parent=1 // pred_check
      _
    $region7: #{tpu_custom_call.1} parent=1 // pred_check_branch
      %28 = sbr.rel (0) target = $region9
    $region8: #{tpu_custom_call.1} parent=1 // pred_region
      %30 = vsyncadd [#allocation5], 0
      %s32 = sshll.u32 %s1, 4
      %s33 = int_to_ptr.hbm [resolvable:$true] %s32
      %35 = dma.hbm_to_smem %s33, 16, [#allocation7], [#allocation5]
    $region9: #{tpu_custom_call.1} parent=1 // pred_fallthru
      _
    // Predicated region
    $region10: #{tpu_custom_call.1} parent=1 // pred_check
      _
    $region11: #{tpu_custom_call.1} parent=1 // pred_check_branch
      %37 = sbr.rel (0) target = $region13
    $region12: #{tpu_custom_call.1} parent=1 // pred_region
      %39 = vsyncadd [#allocation6], 0
      %s41 = sshll.u32 %s2, 4
      %s42 = int_to_ptr.vmem [resolvable:$true] %s41
      %44 = dma.vmem_to_smem %s42, 16, [#allocation8], [#allocation6]
    $region13: #{tpu_custom_call.1} parent=1 // pred_fallthru
      _
    // Predicated region
    $region14: #{tpu_custom_call.1} parent=1 // pred_check
      _
    $region15: #{tpu_custom_call.1} parent=1 // pred_check_branch
      %46 = sbr.rel (0) target = $region17
    $region16: #{tpu_custom_call.1} parent=1 // pred_region
      %48 = vsyncadd [#allocation10], 0
      %s50 = sshll.u32 %s3, 4
      %s51 = int_to_ptr.vmem [resolvable:$true] %s50
      %53 = dma.vmem_to_smem %s51, 16, [#allocation9], [#allocation10]
    $region17: #{tpu_custom_call.1} parent=1 // pred_fallthru
      _
    // Predicated region
    $region18: #{tpu_custom_call.1} parent=1 // pred_check
      _
    $region19: #{tpu_custom_call.1} parent=1 // pred_check_branch
      %55 = sbr.rel (0) target = $region21
    $region20: #{tpu_custom_call.1} parent=1 // pred_region
      %57 = dma.done [#allocation3], 16384
    $region21: #{tpu_custom_call.1} parent=1 // pred_fallthru
      _
    // Predicated region
    $region22: #{tpu_custom_call.1} parent=1 // pred_check
      _
    $region23: #{tpu_custom_call.1} parent=1 // pred_check_branch
      %59 = sbr.rel (0) target = $region25
    $region24: #{tpu_custom_call.1} parent=1 // pred_region
      %61 = dma.done [#allocation5], 16
    $region25: #{tpu_custom_call.1} parent=1 // pred_fallthru
      _
    // Predicated region
    $region26: #{tpu_custom_call.1} parent=1 // pred_check
      _
    $region27: #{tpu_custom_call.1} parent=1 // pred_check_branch
      %63 = sbr.rel (0) target = $region29
    $region28: #{tpu_custom_call.1} parent=1 // pred_region
      %65 = dma.done [#allocation6], 16
    $region29: #{tpu_custom_call.1} parent=1 // pred_fallthru
      _
    // Predicated region
    $region30: #{tpu_custom_call.1} parent=1 // pred_check
      _
    $region31: #{tpu_custom_call.1} parent=1 // pred_check_branch
      %67 = sbr.rel (0) target = $region33
    $region32: #{tpu_custom_call.1} parent=1 // pred_region
      %69 = dma.done [#allocation10], 16
    $region33: #{tpu_custom_call.1} parent=1 // pred_fallthru
      _
    %70 = sfence
    %v71 = vld [vmem:[#allocation2] sm:$0xff]
    %v72 = vld [vmem:[#allocation2 + $0x8] sm:$0x1f]
    %v73 = vld [vmem:[#allocation2 + $0x10] sm:$0xff]
    %v74 = vld [vmem:[#allocation2 + $0x18] sm:$0x1f]
    %v75 = vld [vmem:[#allocation2 + $0x20] sm:$0xff]
    %v76 = vld [vmem:[#allocation2 + $0x28] sm:$0x1f]
    %v77 = vld [vmem:[#allocation2 + $0x30] sm:$0xff]
    %v78 = vld [vmem:[#allocation2 + $0x38] sm:$0x1f]
    %v79 = vld [vmem:[#allocation2 + $0x40] sm:$0xff]
    %v80 = vld [vmem:[#allocation2 + $0x48] sm:$0x1f]
    %v81 = vld [vmem:[#allocation2 + $0x50] sm:$0xff]
    %v82 = vld [vmem:[#allocation2 + $0x58] sm:$0x1f]
    %v83 = vld [vmem:[#allocation2 + $0x60] sm:$0xff]
    %v84 = vld [vmem:[#allocation2 + $0x68] sm:$0x1f]
    %v85 = vld [vmem:[#allocation2 + $0x70] sm:$0xff]
    %v86 = vld [vmem:[#allocation2 + $0x78] sm:$0x1f]
    %v87 = vld [vmem:[#allocation2 + $0x80] sm:$0xff]
    %v88 = vld [vmem:[#allocation2 + $0x88] sm:$0x1f]
    %v89 = vld [vmem:[#allocation2 + $0x90] sm:$0xff]
    %v90 = vld [vmem:[#allocation2 + $0x98] sm:$0x1f]
    %v91 = vld [vmem:[#allocation2 + $0xa0] sm:$0xff]
    %v92 = vld [vmem:[#allocation2 + $0xa8] sm:$0x1f]
    %v93 = vld [vmem:[#allocation2 + $0xb0] sm:$0xff]
    %v94 = vld [vmem:[#allocation2 + $0xb8] sm:$0x1f]
    %v95 = vld [vmem:[#allocation2 + $0xc0] sm:$0xff]
    %v96 = vld [vmem:[#allocation2 + $0xc8] sm:$0x1f]
    %s97 = sld [smem:[#allocation7]]
    %v98 = vstv %s97
    %v99 = vmul.f32 %v71, %v98
    %v100 = vmul.f32 %v72, %v98
    %v101 = vmul.f32 %v73, %v98
    %v102 = vmul.f32 %v74, %v98
    %v103 = vmul.f32 %v75, %v98
    %v104 = vmul.f32 %v76, %v98
    %v105 = vmul.f32 %v77, %v98
    %v106 = vmul.f32 %v78, %v98
    %v107 = vmul.f32 %v79, %v98
    %v108 = vmul.f32 %v80, %v98
    %v109 = vmul.f32 %v81, %v98
    %v110 = vmul.f32 %v82, %v98
    %v111 = vmul.f32 %v83, %v98
    %v112 = vmul.f32 %v84, %v98
    %v113 = vmul.f32 %v85, %v98
    %v114 = vmul.f32 %v86, %v98
    %v115 = vmul.f32 %v87, %v98
    %v116 = vmul.f32 %v88, %v98
    %v117 = vmul.f32 %v89, %v98
    %v118 = vmul.f32 %v90, %v98
    %v119 = vmul.f32 %v91, %v98
    %v120 = vmul.f32 %v92, %v98
    %v121 = vmul.f32 %v93, %v98
    %v122 = vmul.f32 %v94, %v98
    %v123 = vmul.f32 %v95, %v98
    %v124 = vmul.f32 %v96, %v98
    %v125 = vld [vmem:[#allocation2 + $0x3] sm:$0xff]
    %v126 = vld [vmem:[#allocation2 + $0xb] sm:$0x1f]
    %v127 = vld [vmem:[#allocation2 + $0x13] sm:$0xff]
    %v128 = vld [vmem:[#allocation2 + $0x1b] sm:$0x1f]
    %v129 = vld [vmem:[#allocation2 + $0x23] sm:$0xff]
    %v130 = vld [vmem:[#allocation2 + $0x2b] sm:$0x1f]
    %v131 = vld [vmem:[#allocation2 + $0x33] sm:$0xff]
    %v132 = vld [vmem:[#allocation2 + $0x3b] sm:$0x1f]
    %v133 = vld [vmem:[#allocation2 + $0x43] sm:$0xff]
    %v134 = vld [vmem:[#allocation2 + $0x4b] sm:$0x1f]
    %v135 = vld [vmem:[#allocation2 + $0x53] sm:$0xff]
    %v136 = vld [vmem:[#allocation2 + $0x5b] sm:$0x1f]
    %v137 = vld [vmem:[#allocation2 + $0x63] sm:$0xff]
    %v138 = vld [vmem:[#allocation2 + $0x6b] sm:$0x1f]
    %v139 = vld [vmem:[#allocation2 + $0x73] sm:$0xff]
    %v140 = vld [vmem:[#allocation2 + $0x7b] sm:$0x1f]
    %v141 = vld [vmem:[#allocation2 + $0x83] sm:$0xff]
    %v142 = vld [vmem:[#allocation2 + $0x8b] sm:$0x1f]
    %v143 = vld [vmem:[#allocation2 + $0x93] sm:$0xff]
    %v144 = vld [vmem:[#allocation2 + $0x9b] sm:$0x1f]
    %v145 = vld [vmem:[#allocation2 + $0xa3] sm:$0xff]
    %v146 = vld [vmem:[#allocation2 + $0xab] sm:$0x1f]
    %v147 = vld [vmem:[#allocation2 + $0xb3] sm:$0xff]
    %v148 = vld [vmem:[#allocation2 + $0xbb] sm:$0x1f]
    %v149 = vld [vmem:[#allocation2 + $0xc3] sm:$0xff]
    %v150 = vld [vmem:[#allocation2 + $0xcb] sm:$0x1f]
    %s151 = sld [smem:[#allocation7 + $0x1]]
    %v152 = vstv %s151
    %v153 = vmul.f32 %v125, %v152
    %v154 = vmul.f32 %v126, %v152
    %v155 = vmul.f32 %v127, %v152
    %v156 = vmul.f32 %v128, %v152
    %v157 = vmul.f32 %v129, %v152
    %v158 = vmul.f32 %v130, %v152
    %v159 = vmul.f32 %v131, %v152
    %v160 = vmul.f32 %v132, %v152
    %v161 = vmul.f32 %v133, %v152
    %v162 = vmul.f32 %v134, %v152
    %v163 = vmul.f32 %v135, %v152
    %v164 = vmul.f32 %v136, %v152
    %v165 = vmul.f32 %v137, %v152
    %v166 = vmul.f32 %v138, %v152
    %v167 = vmul.f32 %v139, %v152
    %v168 = vmul.f32 %v140, %v152
    %v169 = vmul.f32 %v141, %v152
    %v170 = vmul.f32 %v142, %v152
    %v171 = vmul.f32 %v143, %v152
    %v172 = vmul.f32 %v144, %v152
    %v173 = vmul.f32 %v145, %v152
    %v174 = vmul.f32 %v146, %v152
    %v175 = vmul.f32 %v147, %v152
    %v176 = vmul.f32 %v148, %v152
    %v177 = vmul.f32 %v149, %v152
    %v178 = vmul.f32 %v150, %v152
    %s179 = scalar_lea.vmem [#allocation2], 48
    %v180 = vld [vmem:[%s179] sm:$0xff]
    %v181 = vld [vmem:[%s179 + $0x8] sm:$0x1f]
    %v182 = vld [vmem:[%s179 + $0x10] sm:$0xff]
    %v183 = vld [vmem:[%s179 + $0x18] sm:$0x1f]
    %v184 = vld [vmem:[%s179 + $0x20] sm:$0xff]
    %v185 = vld [vmem:[%s179 + $0x28] sm:$0x1f]
    %v186 = vld [vmem:[%s179 + $0x30] sm:$0xff]
    %v187 = vld [vmem:[%s179 + $0x38] sm:$0x1f]
    %v188 = vld [vmem:[%s179 + $0x40] sm:$0xff]
    %v189 = vld [vmem:[%s179 + $0x48] sm:$0x1f]
    %v190 = vld [vmem:[%s179 + $0x50] sm:$0xff]
    %v191 = vld [vmem:[%s179 + $0x58] sm:$0x1f]
    %v192 = vld [vmem:[%s179 + $0x60] sm:$0xff]
    %v193 = vld [vmem:[%s179 + $0x68] sm:$0x1f]
    %v194 = vld [vmem:[%s179 + $0x70] sm:$0xff]
    %v195 = vld [vmem:[%s179 + $0x78] sm:$0x1f]
    %v196 = vld [vmem:[%s179 + $0x80] sm:$0xff]
    %v197 = vld [vmem:[%s179 + $0x88] sm:$0x1f]
    %v198 = vld [vmem:[%s179 + $0x90] sm:$0xff]
    %v199 = vld [vmem:[%s179 + $0x98] sm:$0x1f]
    %v200 = vld [vmem:[%s179 + $0xa0] sm:$0xff]
    %v201 = vld [vmem:[%s179 + $0xa8] sm:$0x1f]
    %v202 = vld [vmem:[%s179 + $0xb0] sm:$0xff]
    %v203 = vld [vmem:[%s179 + $0xb8] sm:$0x1f]
    %v204 = vld [vmem:[%s179 + $0xc0] sm:$0xff]
    %v205 = vld [vmem:[%s179 + $0xc8] sm:$0x1f]
    %s206 = sld [smem:[#allocation7 + $0x2]]
    %v207 = vstv %s206
    %v208 = vmul.f32 %v180, %v207
    %v209 = vmul.f32 %v181, %v207
    %v210 = vmul.f32 %v182, %v207
    %v211 = vmul.f32 %v183, %v207
    %v212 = vmul.f32 %v184, %v207
    %v213 = vmul.f32 %v185, %v207
    %v214 = vmul.f32 %v186, %v207
    %v215 = vmul.f32 %v187, %v207
    %v216 = vmul.f32 %v188, %v207
    %v217 = vmul.f32 %v189, %v207
    %v218 = vmul.f32 %v190, %v207
    %v219 = vmul.f32 %v191, %v207
    %v220 = vmul.f32 %v192, %v207
    %v221 = vmul.f32 %v193, %v207
    %v222 = vmul.f32 %v194, %v207
    %v223 = vmul.f32 %v195, %v207
    %v224 = vmul.f32 %v196, %v207
    %v225 = vmul.f32 %v197, %v207
    %v226 = vmul.f32 %v198, %v207
    %v227 = vmul.f32 %v199, %v207
    %v228 = vmul.f32 %v200, %v207
    %v229 = vmul.f32 %v201, %v207
    %v230 = vmul.f32 %v202, %v207
    %v231 = vmul.f32 %v203, %v207
    %v232 = vmul.f32 %v204, %v207
    %v233 = vmul.f32 %v205, %v207
    %v234 = vld [vmem:[%s179 + $0x3] sm:$0xff]
    %v235 = vld [vmem:[%s179 + $0xb] sm:$0x1f]
    %v236 = vld [vmem:[%s179 + $0x13] sm:$0xff]
    %v237 = vld [vmem:[%s179 + $0x1b] sm:$0x1f]
    %v238 = vld [vmem:[%s179 + $0x23] sm:$0xff]
    %v239 = vld [vmem:[%s179 + $0x2b] sm:$0x1f]
    %v240 = vld [vmem:[%s179 + $0x33] sm:$0xff]
    %v241 = vld [vmem:[%s179 + $0x3b] sm:$0x1f]
    %v242 = vld [vmem:[%s179 + $0x43] sm:$0xff]
    %v243 = vld [vmem:[%s179 + $0x4b] sm:$0x1f]
    %v244 = vld [vmem:[%s179 + $0x53] sm:$0xff]
    %v245 = vld [vmem:[%s179 + $0x5b] sm:$0x1f]
    %v246 = vld [vmem:[%s179 + $0x63] sm:$0xff]
    %v247 = vld [vmem:[%s179 + $0x6b] sm:$0x1f]
    %v248 = vld [vmem:[%s179 + $0x73] sm:$0xff]
    %v249 = vld [vmem:[%s179 + $0x7b] sm:$0x1f]
    %v250 = vld [vmem:[%s179 + $0x83] sm:$0xff]
    %v251 = vld [vmem:[%s179 + $0x8b] sm:$0x1f]
    %v252 = vld [vmem:[%s179 + $0x93] sm:$0xff]
    %v253 = vld [vmem:[%s179 + $0x9b] sm:$0x1f]
    %v254 = vld [vmem:[%s179 + $0xa3] sm:$0xff]
    %v255 = vld [vmem:[%s179 + $0xab] sm:$0x1f]
    %v256 = vld [vmem:[%s179 + $0xb3] sm:$0xff]
    %v257 = vld [vmem:[%s179 + $0xbb] sm:$0x1f]
    %v258 = vld [vmem:[%s179 + $0xc3] sm:$0xff]
    %v259 = vld [vmem:[%s179 + $0xcb] sm:$0x1f]
    %s260 = sld [smem:[#allocation7 + $0x3]]
    %v261 = vstv %s260
    %v262 = vmul.f32 %v234, %v261
    %v263 = vmul.f32 %v235, %v261
    %v264 = vmul.f32 %v236, %v261
    %v265 = vmul.f32 %v237, %v261
    %v266 = vmul.f32 %v238, %v261
    %v267 = vmul.f32 %v239, %v261
    %v268 = vmul.f32 %v240, %v261
    %v269 = vmul.f32 %v241, %v261
    %v270 = vmul.f32 %v242, %v261
    %v271 = vmul.f32 %v243, %v261
    %v272 = vmul.f32 %v244, %v261
    %v273 = vmul.f32 %v245, %v261
    %v274 = vmul.f32 %v246, %v261
    %v275 = vmul.f32 %v247, %v261
    %v276 = vmul.f32 %v248, %v261
    %v277 = vmul.f32 %v249, %v261
    %v278 = vmul.f32 %v250, %v261
    %v279 = vmul.f32 %v251, %v261
    %v280 = vmul.f32 %v252, %v261
    %v281 = vmul.f32 %v253, %v261
    %v282 = vmul.f32 %v254, %v261
    %v283 = vmul.f32 %v255, %v261
    %v284 = vmul.f32 %v256, %v261
    %v285 = vmul.f32 %v257, %v261
    %v286 = vmul.f32 %v258, %v261
    %v287 = vmul.f32 %v259, %v261
    %s288 = scalar_lea.vmem [#allocation2], 256
    %v289 = vld [vmem:[%s288] sm:$0xff]
    %v290 = vld [vmem:[%s288 + $0x8] sm:$0x1f]
    %v291 = vld [vmem:[%s288 + $0x10] sm:$0xff]
    %v292 = vld [vmem:[%s288 + $0x18] sm:$0x1f]
    %v293 = vld [vmem:[%s288 + $0x20] sm:$0xff]
    %v294 = vld [vmem:[%s288 + $0x28] sm:$0x1f]
    %v295 = vld [vmem:[%s288 + $0x30] sm:$0xff]
    %v296 = vld [vmem:[%s288 + $0x38] sm:$0x1f]
    %v297 = vld [vmem:[%s288 + $0x40] sm:$0xff]
    %v298 = vld [vmem:[%s288 + $0x48] sm:$0x1f]
    %v299 = vld [vmem:[%s288 + $0x50] sm:$0xff]
    %v300 = vld [vmem:[%s288 + $0x58] sm:$0x1f]
    %v301 = vld [vmem:[%s288 + $0x60] sm:$0xff]
    %v302 = vld [vmem:[%s288 + $0x68] sm:$0x1f]
    %v303 = vld [vmem:[%s288 + $0x70] sm:$0xff]
    %v304 = vld [vmem:[%s288 + $0x78] sm:$0x1f]
    %v305 = vld [vmem:[%s288 + $0x80] sm:$0xff]
    %v306 = vld [vmem:[%s288 + $0x88] sm:$0x1f]
    %v307 = vld [vmem:[%s288 + $0x90] sm:$0xff]
    %v308 = vld [vmem:[%s288 + $0x98] sm:$0x1f]
    %v309 = vld [vmem:[%s288 + $0xa0] sm:$0xff]
    %v310 = vld [vmem:[%s288 + $0xa8] sm:$0x1f]
    %v311 = vld [vmem:[%s288 + $0xb0] sm:$0xff]
    %v312 = vld [vmem:[%s288 + $0xb8] sm:$0x1f]
    %v313 = vld [vmem:[%s288 + $0xc0] sm:$0xff]
    %v314 = vld [vmem:[%s288 + $0xc8] sm:$0x1f]
    %s315 = sld [smem:[#allocation7 + $0x4]]
    %v316 = vstv %s315
    %v317 = vmul.f32 %v289, %v316
    %v318 = vmul.f32 %v290, %v316
    %v319 = vmul.f32 %v291, %v316
    %v320 = vmul.f32 %v292, %v316
    %v321 = vmul.f32 %v293, %v316
    %v322 = vmul.f32 %v294, %v316
    %v323 = vmul.f32 %v295, %v316
    %v324 = vmul.f32 %v296, %v316
    %v325 = vmul.f32 %v297, %v316
    %v326 = vmul.f32 %v298, %v316
    %v327 = vmul.f32 %v299, %v316
    %v328 = vmul.f32 %v300, %v316
    %v329 = vmul.f32 %v301, %v316
    %v330 = vmul.f32 %v302, %v316
    %v331 = vmul.f32 %v303, %v316
    %v332 = vmul.f32 %v304, %v316
    %v333 = vmul.f32 %v305, %v316
    %v334 = vmul.f32 %v306, %v316
    %v335 = vmul.f32 %v307, %v316
    %v336 = vmul.f32 %v308, %v316
    %v337 = vmul.f32 %v309, %v316
    %v338 = vmul.f32 %v310, %v316
    %v339 = vmul.f32 %v311, %v316
    %v340 = vmul.f32 %v312, %v316
    %v341 = vmul.f32 %v313, %v316
    %v342 = vmul.f32 %v314, %v316
    %v343 = vld [vmem:[%s288 + $0x3] sm:$0xff]
    %v344 = vld [vmem:[%s288 + $0xb] sm:$0x1f]
    %v345 = vld [vmem:[%s288 + $0x13] sm:$0xff]
    %v346 = vld [vmem:[%s288 + $0x1b] sm:$0x1f]
    %v347 = vld [vmem:[%s288 + $0x23] sm:$0xff]
    %v348 = vld [vmem:[%s288 + $0x2b] sm:$0x1f]
    %v349 = vld [vmem:[%s288 + $0x33] sm:$0xff]
    %v350 = vld [vmem:[%s288 + $0x3b] sm:$0x1f]
    %v351 = vld [vmem:[%s288 + $0x43] sm:$0xff]
    %v352 = vld [vmem:[%s288 + $0x4b] sm:$0x1f]
    %v353 = vld [vmem:[%s288 + $0x53] sm:$0xff]
    %v354 = vld [vmem:[%s288 + $0x5b] sm:$0x1f]
    %v355 = vld [vmem:[%s288 + $0x63] sm:$0xff]
    %v356 = vld [vmem:[%s288 + $0x6b] sm:$0x1f]
    %v357 = vld [vmem:[%s288 + $0x73] sm:$0xff]
    %v358 = vld [vmem:[%s288 + $0x7b] sm:$0x1f]
    %v359 = vld [vmem:[%s288 + $0x83] sm:$0xff]
    %v360 = vld [vmem:[%s288 + $0x8b] sm:$0x1f]
    %v361 = vld [vmem:[%s288 + $0x93] sm:$0xff]
    %v362 = vld [vmem:[%s288 + $0x9b] sm:$0x1f]
    %v363 = vld [vmem:[%s288 + $0xa3] sm:$0xff]
    %v364 = vld [vmem:[%s288 + $0xab] sm:$0x1f]
    %v365 = vld [vmem:[%s288 + $0xb3] sm:$0xff]
    %v366 = vld [vmem:[%s288 + $0xbb] sm:$0x1f]
    %v367 = vld [vmem:[%s288 + $0xc3] sm:$0xff]
    %v368 = vld [vmem:[%s288 + $0xcb] sm:$0x1f]
    %s369 = sld [smem:[#allocation7 + $0x5]]
    %v370 = vstv %s369
    %v371 = vmul.f32 %v343, %v370
    %v372 = vmul.f32 %v344, %v370
    %v373 = vmul.f32 %v345, %v370
    %v374 = vmul.f32 %v346, %v370
    %v375 = vmul.f32 %v347, %v370
    %v376 = vmul.f32 %v348, %v370
    %v377 = vmul.f32 %v349, %v370
    %v378 = vmul.f32 %v350, %v370
    %v379 = vmul.f32 %v351, %v370
    %v380 = vmul.f32 %v352, %v370
    %v381 = vmul.f32 %v353, %v370
    %v382 = vmul.f32 %v354, %v370
    %v383 = vmul.f32 %v355, %v370
    %v384 = vmul.f32 %v356, %v370
    %v385 = vmul.f32 %v357, %v370
    %v386 = vmul.f32 %v358, %v370
    %v387 = vmul.f32 %v359, %v370
    %v388 = vmul.f32 %v360, %v370
    %v389 = vmul.f32 %v361, %v370
    %v390 = vmul.f32 %v362, %v370
    %v391 = vmul.f32 %v363, %v370
    %v392 = vmul.f32 %v364, %v370
    %v393 = vmul.f32 %v365, %v370
    %v394 = vmul.f32 %v366, %v370
    %v395 = vmul.f32 %v367, %v370
    %v396 = vmul.f32 %v368, %v370
    %s397 = scalar_lea.vmem [#allocation2], 304
    %v398 = vld [vmem:[%s397] sm:$0xff]
    %v399 = vld [vmem:[%s397 + $0x8] sm:$0x1f]
    %v400 = vld [vmem:[%s397 + $0x10] sm:$0xff]
    %v401 = vld [vmem:[%s397 + $0x18] sm:$0x1f]
    %v402 = vld [vmem:[%s397 + $0x20] sm:$0xff]
    %v403 = vld [vmem:[%s397 + $0x28] sm:$0x1f]
    %v404 = vld [vmem:[%s397 + $0x30] sm:$0xff]
    %v405 = vld [vmem:[%s397 + $0x38] sm:$0x1f]
    %v406 = vld [vmem:[%s397 + $0x40] sm:$0xff]
    %v407 = vld [vmem:[%s397 + $0x48] sm:$0x1f]
    %v408 = vld [vmem:[%s397 + $0x50] sm:$0xff]
    %v409 = vld [vmem:[%s397 + $0x58] sm:$0x1f]
    %v410 = vld [vmem:[%s397 + $0x60] sm:$0xff]
    %v411 = vld [vmem:[%s397 + $0x68] sm:$0x1f]
    %v412 = vld [vmem:[%s397 + $0x70] sm:$0xff]
    %v413 = vld [vmem:[%s397 + $0x78] sm:$0x1f]
    %v414 = vld [vmem:[%s397 + $0x80] sm:$0xff]
    %v415 = vld [vmem:[%s397 + $0x88] sm:$0x1f]
    %v416 = vld [vmem:[%s397 + $0x90] sm:$0xff]
    %v417 = vld [vmem:[%s397 + $0x98] sm:$0x1f]
    %v418 = vld [vmem:[%s397 + $0xa0] sm:$0xff]
    %v419 = vld [vmem:[%s397 + $0xa8] sm:$0x1f]
    %v420 = vld [vmem:[%s397 + $0xb0] sm:$0xff]
    %v421 = vld [vmem:[%s397 + $0xb8] sm:$0x1f]
    %v422 = vld [vmem:[%s397 + $0xc0] sm:$0xff]
    %v423 = vld [vmem:[%s397 + $0xc8] sm:$0x1f]
    %s424 = sld [smem:[#allocation7 + $0x6]]
    %v425 = vstv %s424
    %v426 = vmul.f32 %v398, %v425
    %v427 = vmul.f32 %v399, %v425
    %v428 = vmul.f32 %v400, %v425
    %v429 = vmul.f32 %v401, %v425
    %v430 = vmul.f32 %v402, %v425
    %v431 = vmul.f32 %v403, %v425
    %v432 = vmul.f32 %v404, %v425
    %v433 = vmul.f32 %v405, %v425
    %v434 = vmul.f32 %v406, %v425
    %v435 = vmul.f32 %v407, %v425
    %v436 = vmul.f32 %v408, %v425
    %v437 = vmul.f32 %v409, %v425
    %v438 = vmul.f32 %v410, %v425
    %v439 = vmul.f32 %v411, %v425
    %v440 = vmul.f32 %v412, %v425
    %v441 = vmul.f32 %v413, %v425
    %v442 = vmul.f32 %v414, %v425
    %v443 = vmul.f32 %v415, %v425
    %v444 = vmul.f32 %v416, %v425
    %v445 = vmul.f32 %v417, %v425
    %v446 = vmul.f32 %v418, %v425
    %v447 = vmul.f32 %v419, %v425
    %v448 = vmul.f32 %v420, %v425
    %v449 = vmul.f32 %v421, %v425
    %v450 = vmul.f32 %v422, %v425
    %v451 = vmul.f32 %v423, %v425
    %v452 = vld [vmem:[%s397 + $0x3] sm:$0xff]
    %v453 = vld [vmem:[%s397 + $0xb] sm:$0x1f]
    %v454 = vld [vmem:[%s397 + $0x13] sm:$0xff]
    %v455 = vld [vmem:[%s397 + $0x1b] sm:$0x1f]
    %v456 = vld [vmem:[%s397 + $0x23] sm:$0xff]
    %v457 = vld [vmem:[%s397 + $0x2b] sm:$0x1f]
    %v458 = vld [vmem:[%s397 + $0x33] sm:$0xff]
    %v459 = vld [vmem:[%s397 + $0x3b] sm:$0x1f]
    %v460 = vld [vmem:[%s397 + $0x43] sm:$0xff]
    %v461 = vld [vmem:[%s397 + $0x4b] sm:$0x1f]
    %v462 = vld [vmem:[%s397 + $0x53] sm:$0xff]
    %v463 = vld [vmem:[%s397 + $0x5b] sm:$0x1f]
    %v464 = vld [vmem:[%s397 + $0x63] sm:$0xff]
    %v465 = vld [vmem:[%s397 + $0x6b] sm:$0x1f]
    %v466 = vld [vmem:[%s397 + $0x73] sm:$0xff]
    %v467 = vld [vmem:[%s397 + $0x7b] sm:$0x1f]
    %v468 = vld [vmem:[%s397 + $0x83] sm:$0xff]
    %v469 = vld [vmem:[%s397 + $0x8b] sm:$0x1f]
    %v470 = vld [vmem:[%s397 + $0x93] sm:$0xff]
    %v471 = vld [vmem:[%s397 + $0x9b] sm:$0x1f]
    %v472 = vld [vmem:[%s397 + $0xa3] sm:$0xff]
    %v473 = vld [vmem:[%s397 + $0xab] sm:$0x1f]
    %v474 = vld [vmem:[%s397 + $0xb3] sm:$0xff]
    %v475 = vld [vmem:[%s397 + $0xbb] sm:$0x1f]
    %v476 = vld [vmem:[%s397 + $0xc3] sm:$0xff]
    %v477 = vld [vmem:[%s397 + $0xcb] sm:$0x1f]
    %s478 = sld [smem:[#allocation7 + $0x7]]
    %v479 = vstv %s478
    %v480 = vmul.f32 %v452, %v479
    %v481 = vmul.f32 %v453, %v479
    %v482 = vmul.f32 %v454, %v479
    %v483 = vmul.f32 %v455, %v479
    %v484 = vmul.f32 %v456, %v479
    %v485 = vmul.f32 %v457, %v479
    %v486 = vmul.f32 %v458, %v479
    %v487 = vmul.f32 %v459, %v479
    %v488 = vmul.f32 %v460, %v479
    %v489 = vmul.f32 %v461, %v479
    %v490 = vmul.f32 %v462, %v479
    %v491 = vmul.f32 %v463, %v479
    %v492 = vmul.f32 %v464, %v479
    %v493 = vmul.f32 %v465, %v479
    %v494 = vmul.f32 %v466, %v479
    %v495 = vmul.f32 %v467, %v479
    %v496 = vmul.f32 %v468, %v479
    %v497 = vmul.f32 %v469, %v479
    %v498 = vmul.f32 %v470, %v479
    %v499 = vmul.f32 %v471, %v479
    %v500 = vmul.f32 %v472, %v479
    %v501 = vmul.f32 %v473, %v479
    %v502 = vmul.f32 %v474, %v479
    %v503 = vmul.f32 %v475, %v479
    %v504 = vmul.f32 %v476, %v479
    %v505 = vmul.f32 %v477, %v479
    %s506 = scalar_lea.vmem [#allocation2], 512
    %v507 = vld [vmem:[%s506] sm:$0xff]
    %v508 = vld [vmem:[%s506 + $0x8] sm:$0x1f]
    %v509 = vld [vmem:[%s506 + $0x10] sm:$0xff]
    %v510 = vld [vmem:[%s506 + $0x18] sm:$0x1f]
    %v511 = vld [vmem:[%s506 + $0x20] sm:$0xff]
    %v512 = vld [vmem:[%s506 + $0x28] sm:$0x1f]
    %v513 = vld [vmem:[%s506 + $0x30] sm:$0xff]
    %v514 = vld [vmem:[%s506 + $0x38] sm:$0x1f]
    %v515 = vld [vmem:[%s506 + $0x40] sm:$0xff]
    %v516 = vld [vmem:[%s506 + $0x48] sm:$0x1f]
    %v517 = vld [vmem:[%s506 + $0x50] sm:$0xff]
    %v518 = vld [vmem:[%s506 + $0x58] sm:$0x1f]
    %v519 = vld [vmem:[%s506 + $0x60] sm:$0xff]
    %v520 = vld [vmem:[%s506 + $0x68] sm:$0x1f]
    %v521 = vld [vmem:[%s506 + $0x70] sm:$0xff]
    %v522 = vld [vmem:[%s506 + $0x78] sm:$0x1f]
    %v523 = vld [vmem:[%s506 + $0x80] sm:$0xff]
    %v524 = vld [vmem:[%s506 + $0x88] sm:$0x1f]
    %v525 = vld [vmem:[%s506 + $0x90] sm:$0xff]
    %v526 = vld [vmem:[%s506 + $0x98] sm:$0x1f]
    %v527 = vld [vmem:[%s506 + $0xa0] sm:$0xff]
    %v528 = vld [vmem:[%s506 + $0xa8] sm:$0x1f]
    %v529 = vld [vmem:[%s506 + $0xb0] sm:$0xff]
    %v530 = vld [vmem:[%s506 + $0xb8] sm:$0x1f]
    %v531 = vld [vmem:[%s506 + $0xc0] sm:$0xff]
    %v532 = vld [vmem:[%s506 + $0xc8] sm:$0x1f]
    %s533 = sld [smem:[#allocation7 + $0x8]]
    %v534 = vstv %s533
    %v535 = vmul.f32 %v507, %v534
    %v536 = vmul.f32 %v508, %v534
    %v537 = vmul.f32 %v509, %v534
    %v538 = vmul.f32 %v510, %v534
    %v539 = vmul.f32 %v511, %v534
    %v540 = vmul.f32 %v512, %v534
    %v541 = vmul.f32 %v513, %v534
    %v542 = vmul.f32 %v514, %v534
    %v543 = vmul.f32 %v515, %v534
    %v544 = vmul.f32 %v516, %v534
    %v545 = vmul.f32 %v517, %v534
    %v546 = vmul.f32 %v518, %v534
    %v547 = vmul.f32 %v519, %v534
    %v548 = vmul.f32 %v520, %v534
    %v549 = vmul.f32 %v521, %v534
    %v550 = vmul.f32 %v522, %v534
    %v551 = vmul.f32 %v523, %v534
    %v552 = vmul.f32 %v524, %v534
    %v553 = vmul.f32 %v525, %v534
    %v554 = vmul.f32 %v526, %v534
    %v555 = vmul.f32 %v527, %v534
    %v556 = vmul.f32 %v528, %v534
    %v557 = vmul.f32 %v529, %v534
    %v558 = vmul.f32 %v530, %v534
    %v559 = vmul.f32 %v531, %v534
    %v560 = vmul.f32 %v532, %v534
    %v561 = vld [vmem:[%s506 + $0x3] sm:$0xff]
    %v562 = vld [vmem:[%s506 + $0xb] sm:$0x1f]
    %v563 = vld [vmem:[%s506 + $0x13] sm:$0xff]
    %v564 = vld [vmem:[%s506 + $0x1b] sm:$0x1f]
    %v565 = vld [vmem:[%s506 + $0x23] sm:$0xff]
    %v566 = vld [vmem:[%s506 + $0x2b] sm:$0x1f]
    %v567 = vld [vmem:[%s506 + $0x33] sm:$0xff]
    %v568 = vld [vmem:[%s506 + $0x3b] sm:$0x1f]
    %v569 = vld [vmem:[%s506 + $0x43] sm:$0xff]
    %v570 = vld [vmem:[%s506 + $0x4b] sm:$0x1f]
    %v571 = vld [vmem:[%s506 + $0x53] sm:$0xff]
    %v572 = vld [vmem:[%s506 + $0x5b] sm:$0x1f]
    %v573 = vld [vmem:[%s506 + $0x63] sm:$0xff]
    %v574 = vld [vmem:[%s506 + $0x6b] sm:$0x1f]
    %v575 = vld [vmem:[%s506 + $0x73] sm:$0xff]
    %v576 = vld [vmem:[%s506 + $0x7b] sm:$0x1f]
    %v577 = vld [vmem:[%s506 + $0x83] sm:$0xff]
    %v578 = vld [vmem:[%s506 + $0x8b] sm:$0x1f]
    %v579 = vld [vmem:[%s506 + $0x93] sm:$0xff]
    %v580 = vld [vmem:[%s506 + $0x9b] sm:$0x1f]
    %v581 = vld [vmem:[%s506 + $0xa3] sm:$0xff]
    %v582 = vld [vmem:[%s506 + $0xab] sm:$0x1f]
    %v583 = vld [vmem:[%s506 + $0xb3] sm:$0xff]
    %v584 = vld [vmem:[%s506 + $0xbb] sm:$0x1f]
    %v585 = vld [vmem:[%s506 + $0xc3] sm:$0xff]
    %v586 = vld [vmem:[%s506 + $0xcb] sm:$0x1f]
    %s587 = sld [smem:[#allocation7 + $0x9]]
    %v588 = vstv %s587
    %v589 = vmul.f32 %v561, %v588
    %v590 = vmul.f32 %v562, %v588
    %v591 = vmul.f32 %v563, %v588
    %v592 = vmul.f32 %v564, %v588
    %v593 = vmul.f32 %v565, %v588
    %v594 = vmul.f32 %v566, %v588
    %v595 = vmul.f32 %v567, %v588
    %v596 = vmul.f32 %v568, %v588
    %v597 = vmul.f32 %v569, %v588
    %v598 = vmul.f32 %v570, %v588
    %v599 = vmul.f32 %v571, %v588
    %v600 = vmul.f32 %v572, %v588
    %v601 = vmul.f32 %v573, %v588
    %v602 = vmul.f32 %v574, %v588
    %v603 = vmul.f32 %v575, %v588
    %v604 = vmul.f32 %v576, %v588
    %v605 = vmul.f32 %v577, %v588
    %v606 = vmul.f32 %v578, %v588
    %v607 = vmul.f32 %v579, %v588
    %v608 = vmul.f32 %v580, %v588
    %v609 = vmul.f32 %v581, %v588
    %v610 = vmul.f32 %v582, %v588
    %v611 = vmul.f32 %v583, %v588
    %v612 = vmul.f32 %v584, %v588
    %v613 = vmul.f32 %v585, %v588
    %v614 = vmul.f32 %v586, %v588
    %s615 = scalar_lea.vmem [#allocation2], 560
    %v616 = vld [vmem:[%s615] sm:$0xff]
    %v617 = vld [vmem:[%s615 + $0x8] sm:$0x1f]
    %v618 = vld [vmem:[%s615 + $0x10] sm:$0xff]
    %v619 = vld [vmem:[%s615 + $0x18] sm:$0x1f]
    %v620 = vld [vmem:[%s615 + $0x20] sm:$0xff]
    %v621 = vld [vmem:[%s615 + $0x28] sm:$0x1f]
    %v622 = vld [vmem:[%s615 + $0x30] sm:$0xff]
    %v623 = vld [vmem:[%s615 + $0x38] sm:$0x1f]
    %v624 = vld [vmem:[%s615 + $0x40] sm:$0xff]
    %v625 = vld [vmem:[%s615 + $0x48] sm:$0x1f]
    %v626 = vld [vmem:[%s615 + $0x50] sm:$0xff]
    %v627 = vld [vmem:[%s615 + $0x58] sm:$0x1f]
    %v628 = vld [vmem:[%s615 + $0x60] sm:$0xff]
    %v629 = vld [vmem:[%s615 + $0x68] sm:$0x1f]
    %v630 = vld [vmem:[%s615 + $0x70] sm:$0xff]
    %v631 = vld [vmem:[%s615 + $0x78] sm:$0x1f]
    %v632 = vld [vmem:[%s615 + $0x80] sm:$0xff]
    %v633 = vld [vmem:[%s615 + $0x88] sm:$0x1f]
    %v634 = vld [vmem:[%s615 + $0x90] sm:$0xff]
    %v635 = vld [vmem:[%s615 + $0x98] sm:$0x1f]
    %v636 = vld [vmem:[%s615 + $0xa0] sm:$0xff]
    %v637 = vld [vmem:[%s615 + $0xa8] sm:$0x1f]
    %v638 = vld [vmem:[%s615 + $0xb0] sm:$0xff]
    %v639 = vld [vmem:[%s615 + $0xb8] sm:$0x1f]
    %v640 = vld [vmem:[%s615 + $0xc0] sm:$0xff]
    %v641 = vld [vmem:[%s615 + $0xc8] sm:$0x1f]
    %s642 = sld [smem:[#allocation7 + $0xa]]
    %v643 = vstv %s642
    %v644 = vmul.f32 %v616, %v643
    %v645 = vmul.f32 %v617, %v643
    %v646 = vmul.f32 %v618, %v643
    %v647 = vmul.f32 %v619, %v643
    %v648 = vmul.f32 %v620, %v643
    %v649 = vmul.f32 %v621, %v643
    %v650 = vmul.f32 %v622, %v643
    %v651 = vmul.f32 %v623, %v643
    %v652 = vmul.f32 %v624, %v643
    %v653 = vmul.f32 %v625, %v643
    %v654 = vmul.f32 %v626, %v643
    %v655 = vmul.f32 %v627, %v643
    %v656 = vmul.f32 %v628, %v643
    %v657 = vmul.f32 %v629, %v643
    %v658 = vmul.f32 %v630, %v643
    %v659 = vmul.f32 %v631, %v643
    %v660 = vmul.f32 %v632, %v643
    %v661 = vmul.f32 %v633, %v643
    %v662 = vmul.f32 %v634, %v643
    %v663 = vmul.f32 %v635, %v643
    %v664 = vmul.f32 %v636, %v643
    %v665 = vmul.f32 %v637, %v643
    %v666 = vmul.f32 %v638, %v643
    %v667 = vmul.f32 %v639, %v643
    %v668 = vmul.f32 %v640, %v643
    %v669 = vmul.f32 %v641, %v643
    %v670 = vld [vmem:[%s615 + $0x3] sm:$0xff]
    %v671 = vld [vmem:[%s615 + $0xb] sm:$0x1f]
    %v672 = vld [vmem:[%s615 + $0x13] sm:$0xff]
    %v673 = vld [vmem:[%s615 + $0x1b] sm:$0x1f]
    %v674 = vld [vmem:[%s615 + $0x23] sm:$0xff]
    %v675 = vld [vmem:[%s615 + $0x2b] sm:$0x1f]
    %v676 = vld [vmem:[%s615 + $0x33] sm:$0xff]
    %v677 = vld [vmem:[%s615 + $0x3b] sm:$0x1f]
    %v678 = vld [vmem:[%s615 + $0x43] sm:$0xff]
    %v679 = vld [vmem:[%s615 + $0x4b] sm:$0x1f]
    %v680 = vld [vmem:[%s615 + $0x53] sm:$0xff]
    %v681 = vld [vmem:[%s615 + $0x5b] sm:$0x1f]
    %v682 = vld [vmem:[%s615 + $0x63] sm:$0xff]
    %v683 = vld [vmem:[%s615 + $0x6b] sm:$0x1f]
    %v684 = vld [vmem:[%s615 + $0x73] sm:$0xff]
    %v685 = vld [vmem:[%s615 + $0x7b] sm:$0x1f]
    %v686 = vld [vmem:[%s615 + $0x83] sm:$0xff]
    %v687 = vld [vmem:[%s615 + $0x8b] sm:$0x1f]
    %v688 = vld [vmem:[%s615 + $0x93] sm:$0xff]
    %v689 = vld [vmem:[%s615 + $0x9b] sm:$0x1f]
    %v690 = vld [vmem:[%s615 + $0xa3] sm:$0xff]
    %v691 = vld [vmem:[%s615 + $0xab] sm:$0x1f]
    %v692 = vld [vmem:[%s615 + $0xb3] sm:$0xff]
    %v693 = vld [vmem:[%s615 + $0xbb] sm:$0x1f]
    %v694 = vld [vmem:[%s615 + $0xc3] sm:$0xff]
    %v695 = vld [vmem:[%s615 + $0xcb] sm:$0x1f]
    %s696 = sld [smem:[#allocation7 + $0xb]]
    %v697 = vstv %s696
    %v698 = vmul.f32 %v670, %v697
    %v699 = vmul.f32 %v671, %v697
    %v700 = vmul.f32 %v672, %v697
    %v701 = vmul.f32 %v673, %v697
    %v702 = vmul.f32 %v674, %v697
    %v703 = vmul.f32 %v675, %v697
    %v704 = vmul.f32 %v676, %v697
    %v705 = vmul.f32 %v677, %v697
    %v706 = vmul.f32 %v678, %v697
    %v707 = vmul.f32 %v679, %v697
    %v708 = vmul.f32 %v680, %v697
    %v709 = vmul.f32 %v681, %v697
    %v710 = vmul.f32 %v682, %v697
    %v711 = vmul.f32 %v683, %v697
    %v712 = vmul.f32 %v684, %v697
    %v713 = vmul.f32 %v685, %v697
    %v714 = vmul.f32 %v686, %v697
    %v715 = vmul.f32 %v687, %v697
    %v716 = vmul.f32 %v688, %v697
    %v717 = vmul.f32 %v689, %v697
    %v718 = vmul.f32 %v690, %v697
    %v719 = vmul.f32 %v691, %v697
    %v720 = vmul.f32 %v692, %v697
    %v721 = vmul.f32 %v693, %v697
    %v722 = vmul.f32 %v694, %v697
    %v723 = vmul.f32 %v695, %v697
    %s724 = scalar_lea.vmem [#allocation2], 768
    %v725 = vld [vmem:[%s724] sm:$0xff]
    %v726 = vld [vmem:[%s724 + $0x8] sm:$0x1f]
    %v727 = vld [vmem:[%s724 + $0x10] sm:$0xff]
    %v728 = vld [vmem:[%s724 + $0x18] sm:$0x1f]
    %v729 = vld [vmem:[%s724 + $0x20] sm:$0xff]
    %v730 = vld [vmem:[%s724 + $0x28] sm:$0x1f]
    %v731 = vld [vmem:[%s724 + $0x30] sm:$0xff]
    %v732 = vld [vmem:[%s724 + $0x38] sm:$0x1f]
    %v733 = vld [vmem:[%s724 + $0x40] sm:$0xff]
    %v734 = vld [vmem:[%s724 + $0x48] sm:$0x1f]
    %v735 = vld [vmem:[%s724 + $0x50] sm:$0xff]
    %v736 = vld [vmem:[%s724 + $0x58] sm:$0x1f]
    %v737 = vld [vmem:[%s724 + $0x60] sm:$0xff]
    %v738 = vld [vmem:[%s724 + $0x68] sm:$0x1f]
    %v739 = vld [vmem:[%s724 + $0x70] sm:$0xff]
    %v740 = vld [vmem:[%s724 + $0x78] sm:$0x1f]
    %v741 = vld [vmem:[%s724 + $0x80] sm:$0xff]
    %v742 = vld [vmem:[%s724 + $0x88] sm:$0x1f]
    %v743 = vld [vmem:[%s724 + $0x90] sm:$0xff]
    %v744 = vld [vmem:[%s724 + $0x98] sm:$0x1f]
    %v745 = vld [vmem:[%s724 + $0xa0] sm:$0xff]
    %v746 = vld [vmem:[%s724 + $0xa8] sm:$0x1f]
    %v747 = vld [vmem:[%s724 + $0xb0] sm:$0xff]
    %v748 = vld [vmem:[%s724 + $0xb8] sm:$0x1f]
    %v749 = vld [vmem:[%s724 + $0xc0] sm:$0xff]
    %v750 = vld [vmem:[%s724 + $0xc8] sm:$0x1f]
    %s751 = sld [smem:[#allocation7 + $0xc]]
    %v752 = vstv %s751
    %v753 = vmul.f32 %v725, %v752
    %v754 = vmul.f32 %v726, %v752
    %v755 = vmul.f32 %v727, %v752
    %v756 = vmul.f32 %v728, %v752
    %v757 = vmul.f32 %v729, %v752
    %v758 = vmul.f32 %v730, %v752
    %v759 = vmul.f32 %v731, %v752
    %v760 = vmul.f32 %v732, %v752
    %v761 = vmul.f32 %v733, %v752
    %v762 = vmul.f32 %v734, %v752
    %v763 = vmul.f32 %v735, %v752
    %v764 = vmul.f32 %v736, %v752
    %v765 = vmul.f32 %v737, %v752
    %v766 = vmul.f32 %v738, %v752
    %v767 = vmul.f32 %v739, %v752
    %v768 = vmul.f32 %v740, %v752
    %v769 = vmul.f32 %v741, %v752
    %v770 = vmul.f32 %v742, %v752
    %v771 = vmul.f32 %v743, %v752
    %v772 = vmul.f32 %v744, %v752
    %v773 = vmul.f32 %v745, %v752
    %v774 = vmul.f32 %v746, %v752
    %v775 = vmul.f32 %v747, %v752
    %v776 = vmul.f32 %v748, %v752
    %v777 = vmul.f32 %v749, %v752
    %v778 = vmul.f32 %v750, %v752
    %v779 = vld [vmem:[%s724 + $0x3] sm:$0xff]
    %v780 = vld [vmem:[%s724 + $0xb] sm:$0x1f]
    %v781 = vld [vmem:[%s724 + $0x13] sm:$0xff]
    %v782 = vld [vmem:[%s724 + $0x1b] sm:$0x1f]
    %v783 = vld [vmem:[%s724 + $0x23] sm:$0xff]
    %v784 = vld [vmem:[%s724 + $0x2b] sm:$0x1f]
    %v785 = vld [vmem:[%s724 + $0x33] sm:$0xff]
    %v786 = vld [vmem:[%s724 + $0x3b] sm:$0x1f]
    %v787 = vld [vmem:[%s724 + $0x43] sm:$0xff]
    %v788 = vld [vmem:[%s724 + $0x4b] sm:$0x1f]
    %v789 = vld [vmem:[%s724 + $0x53] sm:$0xff]
    %v790 = vld [vmem:[%s724 + $0x5b] sm:$0x1f]
    %v791 = vld [vmem:[%s724 + $0x63] sm:$0xff]
    %v792 = vld [vmem:[%s724 + $0x6b] sm:$0x1f]
    %v793 = vld [vmem:[%s724 + $0x73] sm:$0xff]
    %v794 = vld [vmem:[%s724 + $0x7b] sm:$0x1f]
    %v795 = vld [vmem:[%s724 + $0x83] sm:$0xff]
    %v796 = vld [vmem:[%s724 + $0x8b] sm:$0x1f]
    %v797 = vld [vmem:[%s724 + $0x93] sm:$0xff]
    %v798 = vld [vmem:[%s724 + $0x9b] sm:$0x1f]
    %v799 = vld [vmem:[%s724 + $0xa3] sm:$0xff]
    %v800 = vld [vmem:[%s724 + $0xab] sm:$0x1f]
    %v801 = vld [vmem:[%s724 + $0xb3] sm:$0xff]
    %v802 = vld [vmem:[%s724 + $0xbb] sm:$0x1f]
    %v803 = vld [vmem:[%s724 + $0xc3] sm:$0xff]
    %v804 = vld [vmem:[%s724 + $0xcb] sm:$0x1f]
    %s805 = sld [smem:[#allocation7 + $0xd]]
    %v806 = vstv %s805
    %v807 = vmul.f32 %v779, %v806
    %v808 = vmul.f32 %v780, %v806
    %v809 = vmul.f32 %v781, %v806
    %v810 = vmul.f32 %v782, %v806
    %v811 = vmul.f32 %v783, %v806
    %v812 = vmul.f32 %v784, %v806
    %v813 = vmul.f32 %v785, %v806
    %v814 = vmul.f32 %v786, %v806
    %v815 = vmul.f32 %v787, %v806
    %v816 = vmul.f32 %v788, %v806
    %v817 = vmul.f32 %v789, %v806
    %v818 = vmul.f32 %v790, %v806
    %v819 = vmul.f32 %v791, %v806
    %v820 = vmul.f32 %v792, %v806
    %v821 = vmul.f32 %v793, %v806
    %v822 = vmul.f32 %v794, %v806
    %v823 = vmul.f32 %v795, %v806
    %v824 = vmul.f32 %v796, %v806
    %v825 = vmul.f32 %v797, %v806
    %v826 = vmul.f32 %v798, %v806
    %v827 = vmul.f32 %v799, %v806
    %v828 = vmul.f32 %v800, %v806
    %v829 = vmul.f32 %v801, %v806
    %v830 = vmul.f32 %v802, %v806
    %v831 = vmul.f32 %v803, %v806
    %v832 = vmul.f32 %v804, %v806
    %s833 = scalar_lea.vmem [#allocation2], 816
    %v834 = vld [vmem:[%s833] sm:$0xff]
    %v835 = vld [vmem:[%s833 + $0x8] sm:$0x1f]
    %v836 = vld [vmem:[%s833 + $0x10] sm:$0xff]
    %v837 = vld [vmem:[%s833 + $0x18] sm:$0x1f]
    %v838 = vld [vmem:[%s833 + $0x20] sm:$0xff]
    %v839 = vld [vmem:[%s833 + $0x28] sm:$0x1f]
    %v840 = vld [vmem:[%s833 + $0x30] sm:$0xff]
    %v841 = vld [vmem:[%s833 + $0x38] sm:$0x1f]
    %v842 = vld [vmem:[%s833 + $0x40] sm:$0xff]
    %v843 = vld [vmem:[%s833 + $0x48] sm:$0x1f]
    %v844 = vld [vmem:[%s833 + $0x50] sm:$0xff]
    %v845 = vld [vmem:[%s833 + $0x58] sm:$0x1f]
    %v846 = vld [vmem:[%s833 + $0x60] sm:$0xff]
    %v847 = vld [vmem:[%s833 + $0x68] sm:$0x1f]
    %v848 = vld [vmem:[%s833 + $0x70] sm:$0xff]
    %v849 = vld [vmem:[%s833 + $0x78] sm:$0x1f]
    %v850 = vld [vmem:[%s833 + $0x80] sm:$0xff]
    %v851 = vld [vmem:[%s833 + $0x88] sm:$0x1f]
    %v852 = vld [vmem:[%s833 + $0x90] sm:$0xff]
    %v853 = vld [vmem:[%s833 + $0x98] sm:$0x1f]
    %v854 = vld [vmem:[%s833 + $0xa0] sm:$0xff]
    %v855 = vld [vmem:[%s833 + $0xa8] sm:$0x1f]
    %v856 = vld [vmem:[%s833 + $0xb0] sm:$0xff]
    %v857 = vld [vmem:[%s833 + $0xb8] sm:$0x1f]
    %v858 = vld [vmem:[%s833 + $0xc0] sm:$0xff]
    %v859 = vld [vmem:[%s833 + $0xc8] sm:$0x1f]
    %s860 = sld [smem:[#allocation7 + $0xe]]
    %v861 = vstv %s860
    %v862 = vmul.f32 %v834, %v861
    %v863 = vmul.f32 %v835, %v861
    %v864 = vmul.f32 %v836, %v861
    %v865 = vmul.f32 %v837, %v861
    %v866 = vmul.f32 %v838, %v861
    %v867 = vmul.f32 %v839, %v861
    %v868 = vmul.f32 %v840, %v861
    %v869 = vmul.f32 %v841, %v861
    %v870 = vmul.f32 %v842, %v861
    %v871 = vmul.f32 %v843, %v861
    %v872 = vmul.f32 %v844, %v861
    %v873 = vmul.f32 %v845, %v861
    %v874 = vmul.f32 %v846, %v861
    %v875 = vmul.f32 %v847, %v861
    %v876 = vmul.f32 %v848, %v861
    %v877 = vmul.f32 %v849, %v861
    %v878 = vmul.f32 %v850, %v861
    %v879 = vmul.f32 %v851, %v861
    %v880 = vmul.f32 %v852, %v861
    %v881 = vmul.f32 %v853, %v861
    %v882 = vmul.f32 %v854, %v861
    %v883 = vmul.f32 %v855, %v861
    %v884 = vmul.f32 %v856, %v861
    %v885 = vmul.f32 %v857, %v861
    %v886 = vmul.f32 %v858, %v861
    %v887 = vmul.f32 %v859, %v861
    %v888 = vld [vmem:[%s833 + $0x3] sm:$0xff]
    %v889 = vld [vmem:[%s833 + $0xb] sm:$0x1f]
    %v890 = vld [vmem:[%s833 + $0x13] sm:$0xff]
    %v891 = vld [vmem:[%s833 + $0x1b] sm:$0x1f]
    %v892 = vld [vmem:[%s833 + $0x23] sm:$0xff]
    %v893 = vld [vmem:[%s833 + $0x2b] sm:$0x1f]
    %v894 = vld [vmem:[%s833 + $0x33] sm:$0xff]
    %v895 = vld [vmem:[%s833 + $0x3b] sm:$0x1f]
    %v896 = vld [vmem:[%s833 + $0x43] sm:$0xff]
    %v897 = vld [vmem:[%s833 + $0x4b] sm:$0x1f]
    %v898 = vld [vmem:[%s833 + $0x53] sm:$0xff]
    %v899 = vld [vmem:[%s833 + $0x5b] sm:$0x1f]
    %v900 = vld [vmem:[%s833 + $0x63] sm:$0xff]
    %v901 = vld [vmem:[%s833 + $0x6b] sm:$0x1f]
    %v902 = vld [vmem:[%s833 + $0x73] sm:$0xff]
    %v903 = vld [vmem:[%s833 + $0x7b] sm:$0x1f]
    %v904 = vld [vmem:[%s833 + $0x83] sm:$0xff]
    %v905 = vld [vmem:[%s833 + $0x8b] sm:$0x1f]
    %v906 = vld [vmem:[%s833 + $0x93] sm:$0xff]
    %v907 = vld [vmem:[%s833 + $0x9b] sm:$0x1f]
    %v908 = vld [vmem:[%s833 + $0xa3] sm:$0xff]
    %v909 = vld [vmem:[%s833 + $0xab] sm:$0x1f]
    %v910 = vld [vmem:[%s833 + $0xb3] sm:$0xff]
    %v911 = vld [vmem:[%s833 + $0xbb] sm:$0x1f]
    %v912 = vld [vmem:[%s833 + $0xc3] sm:$0xff]
    %v913 = vld [vmem:[%s833 + $0xcb] sm:$0x1f]
    %s914 = sld [smem:[#allocation7 + $0xf]]
    %v915 = vstv %s914
    %v916 = vmul.f32 %v888, %v915
    %v917 = vmul.f32 %v889, %v915
    %v918 = vmul.f32 %v890, %v915
    %v919 = vmul.f32 %v891, %v915
    %v920 = vmul.f32 %v892, %v915
    %v921 = vmul.f32 %v893, %v915
    %v922 = vmul.f32 %v894, %v915
    %v923 = vmul.f32 %v895, %v915
    %v924 = vmul.f32 %v896, %v915
    %v925 = vmul.f32 %v897, %v915
    %v926 = vmul.f32 %v898, %v915
    %v927 = vmul.f32 %v899, %v915
    %v928 = vmul.f32 %v900, %v915
    %v929 = vmul.f32 %v901, %v915
    %v930 = vmul.f32 %v902, %v915
    %v931 = vmul.f32 %v903, %v915
    %v932 = vmul.f32 %v904, %v915
    %v933 = vmul.f32 %v905, %v915
    %v934 = vmul.f32 %v906, %v915
    %v935 = vmul.f32 %v907, %v915
    %v936 = vmul.f32 %v908, %v915
    %v937 = vmul.f32 %v909, %v915
    %v938 = vmul.f32 %v910, %v915
    %v939 = vmul.f32 %v911, %v915
    %v940 = vmul.f32 %v912, %v915
    %v941 = vmul.f32 %v913, %v915
    %v942 = vadd.f32 %v99, %v317
    %v943 = vadd.f32 %v100, %v318
    %v944 = vadd.f32 %v101, %v319
    %v945 = vadd.f32 %v102, %v320
    %v946 = vadd.f32 %v103, %v321
    %v947 = vadd.f32 %v104, %v322
    %v948 = vadd.f32 %v105, %v323
    %v949 = vadd.f32 %v106, %v324
    %v950 = vadd.f32 %v107, %v325
    %v951 = vadd.f32 %v108, %v326
    %v952 = vadd.f32 %v109, %v327
    %v953 = vadd.f32 %v110, %v328
    %v954 = vadd.f32 %v111, %v329
    %v955 = vadd.f32 %v112, %v330
    %v956 = vadd.f32 %v113, %v331
    %v957 = vadd.f32 %v114, %v332
    %v958 = vadd.f32 %v115, %v333
    %v959 = vadd.f32 %v116, %v334
    %v960 = vadd.f32 %v117, %v335
    %v961 = vadd.f32 %v118, %v336
    %v962 = vadd.f32 %v119, %v337
    %v963 = vadd.f32 %v120, %v338
    %v964 = vadd.f32 %v121, %v339
    %v965 = vadd.f32 %v122, %v340
    %v966 = vadd.f32 %v123, %v341
    %v967 = vadd.f32 %v124, %v342
    %v968 = vadd.f32 %v153, %v371
    %v969 = vadd.f32 %v154, %v372
    %v970 = vadd.f32 %v155, %v373
    %v971 = vadd.f32 %v156, %v374
    %v972 = vadd.f32 %v157, %v375
    %v973 = vadd.f32 %v158, %v376
    %v974 = vadd.f32 %v159, %v377
    %v975 = vadd.f32 %v160, %v378
    %v976 = vadd.f32 %v161, %v379
    %v977 = vadd.f32 %v162, %v380
    %v978 = vadd.f32 %v163, %v381
    %v979 = vadd.f32 %v164, %v382
    %v980 = vadd.f32 %v165, %v383
    %v981 = vadd.f32 %v166, %v384
    %v982 = vadd.f32 %v167, %v385
    %v983 = vadd.f32 %v168, %v386
    %v984 = vadd.f32 %v169, %v387
    %v985 = vadd.f32 %v170, %v388
    %v986 = vadd.f32 %v171, %v389
    %v987 = vadd.f32 %v172, %v390
    %v988 = vadd.f32 %v173, %v391
    %v989 = vadd.f32 %v174, %v392
    %v990 = vadd.f32 %v175, %v393
    %v991 = vadd.f32 %v176, %v394
    %v992 = vadd.f32 %v177, %v395
    %v993 = vadd.f32 %v178, %v396
    %v994 = vadd.f32 %v208, %v426
    %v995 = vadd.f32 %v209, %v427
    %v996 = vadd.f32 %v210, %v428
    %v997 = vadd.f32 %v211, %v429
    %v998 = vadd.f32 %v212, %v430
    %v999 = vadd.f32 %v213, %v431
    %v1000 = vadd.f32 %v214, %v432
    %v1001 = vadd.f32 %v215, %v433
    %v1002 = vadd.f32 %v216, %v434
    %v1003 = vadd.f32 %v217, %v435
    %v1004 = vadd.f32 %v218, %v436
    %v1005 = vadd.f32 %v219, %v437
    %v1006 = vadd.f32 %v220, %v438
    %v1007 = vadd.f32 %v221, %v439
    %v1008 = vadd.f32 %v222, %v440
    %v1009 = vadd.f32 %v223, %v441
    %v1010 = vadd.f32 %v224, %v442
    %v1011 = vadd.f32 %v225, %v443
    %v1012 = vadd.f32 %v226, %v444
    %v1013 = vadd.f32 %v227, %v445
    %v1014 = vadd.f32 %v228, %v446
    %v1015 = vadd.f32 %v229, %v447
    %v1016 = vadd.f32 %v230, %v448
    %v1017 = vadd.f32 %v231, %v449
    %v1018 = vadd.f32 %v232, %v450
    %v1019 = vadd.f32 %v233, %v451
    %v1020 = vadd.f32 %v262, %v480
    %v1021 = vadd.f32 %v263, %v481
    %v1022 = vadd.f32 %v264, %v482
    %v1023 = vadd.f32 %v265, %v483
    %v1024 = vadd.f32 %v266, %v484
    %v1025 = vadd.f32 %v267, %v485
    %v1026 = vadd.f32 %v268, %v486
    %v1027 = vadd.f32 %v269, %v487
    %v1028 = vadd.f32 %v270, %v488
    %v1029 = vadd.f32 %v271, %v489
    %v1030 = vadd.f32 %v272, %v490
    %v1031 = vadd.f32 %v273, %v491
    %v1032 = vadd.f32 %v274, %v492
    %v1033 = vadd.f32 %v275, %v493
    %v1034 = vadd.f32 %v276, %v494
    %v1035 = vadd.f32 %v277, %v495
    %v1036 = vadd.f32 %v278, %v496
    %v1037 = vadd.f32 %v279, %v497
    %v1038 = vadd.f32 %v280, %v498
    %v1039 = vadd.f32 %v281, %v499
    %v1040 = vadd.f32 %v282, %v500
    %v1041 = vadd.f32 %v283, %v501
    %v1042 = vadd.f32 %v284, %v502
    %v1043 = vadd.f32 %v285, %v503
    %v1044 = vadd.f32 %v286, %v504
    %v1045 = vadd.f32 %v287, %v505
    %v1046 = vadd.f32 %v942, %v535
    %v1047 = vadd.f32 %v943, %v536
    %v1048 = vadd.f32 %v944, %v537
    %v1049 = vadd.f32 %v945, %v538
    %v1050 = vadd.f32 %v946, %v539
    %v1051 = vadd.f32 %v947, %v540
    %v1052 = vadd.f32 %v948, %v541
    %v1053 = vadd.f32 %v949, %v542
    %v1054 = vadd.f32 %v950, %v543
    %v1055 = vadd.f32 %v951, %v544
    %v1056 = vadd.f32 %v952, %v545
    %v1057 = vadd.f32 %v953, %v546
    %v1058 = vadd.f32 %v954, %v547
    %v1059 = vadd.f32 %v955, %v548
    %v1060 = vadd.f32 %v956, %v549
    %v1061 = vadd.f32 %v957, %v550
    %v1062 = vadd.f32 %v958, %v551
    %v1063 = vadd.f32 %v959, %v552
    %v1064 = vadd.f32 %v960, %v553
    %v1065 = vadd.f32 %v961, %v554
    %v1066 = vadd.f32 %v962, %v555
    %v1067 = vadd.f32 %v963, %v556
    %v1068 = vadd.f32 %v964, %v557
    %v1069 = vadd.f32 %v965, %v558
    %v1070 = vadd.f32 %v966, %v559
    %v1071 = vadd.f32 %v967, %v560
    %v1072 = vadd.f32 %v968, %v589
    %v1073 = vadd.f32 %v969, %v590
    %v1074 = vadd.f32 %v970, %v591
    %v1075 = vadd.f32 %v971, %v592
    %v1076 = vadd.f32 %v972, %v593
    %v1077 = vadd.f32 %v973, %v594
    %v1078 = vadd.f32 %v974, %v595
    %v1079 = vadd.f32 %v975, %v596
    %v1080 = vadd.f32 %v976, %v597
    %v1081 = vadd.f32 %v977, %v598
    %v1082 = vadd.f32 %v978, %v599
    %v1083 = vadd.f32 %v979, %v600
    %v1084 = vadd.f32 %v980, %v601
    %v1085 = vadd.f32 %v981, %v602
    %v1086 = vadd.f32 %v982, %v603
    %v1087 = vadd.f32 %v983, %v604
    %v1088 = vadd.f32 %v984, %v605
    %v1089 = vadd.f32 %v985, %v606
    %v1090 = vadd.f32 %v986, %v607
    %v1091 = vadd.f32 %v987, %v608
    %v1092 = vadd.f32 %v988, %v609
    %v1093 = vadd.f32 %v989, %v610
    %v1094 = vadd.f32 %v990, %v611
    %v1095 = vadd.f32 %v991, %v612
    %v1096 = vadd.f32 %v992, %v613
    %v1097 = vadd.f32 %v993, %v614
    %v1098 = vadd.f32 %v994, %v644
    %v1099 = vadd.f32 %v995, %v645
    %v1100 = vadd.f32 %v996, %v646
    %v1101 = vadd.f32 %v997, %v647
    %v1102 = vadd.f32 %v998, %v648
    %v1103 = vadd.f32 %v999, %v649
    %v1104 = vadd.f32 %v1000, %v650
    %v1105 = vadd.f32 %v1001, %v651
    %v1106 = vadd.f32 %v1002, %v652
    %v1107 = vadd.f32 %v1003, %v653
    %v1108 = vadd.f32 %v1004, %v654
    %v1109 = vadd.f32 %v1005, %v655
    %v1110 = vadd.f32 %v1006, %v656
    %v1111 = vadd.f32 %v1007, %v657
    %v1112 = vadd.f32 %v1008, %v658
    %v1113 = vadd.f32 %v1009, %v659
    %v1114 = vadd.f32 %v1010, %v660
    %v1115 = vadd.f32 %v1011, %v661
    %v1116 = vadd.f32 %v1012, %v662
    %v1117 = vadd.f32 %v1013, %v663
    %v1118 = vadd.f32 %v1014, %v664
    %v1119 = vadd.f32 %v1015, %v665
    %v1120 = vadd.f32 %v1016, %v666
    %v1121 = vadd.f32 %v1017, %v667
    %v1122 = vadd.f32 %v1018, %v668
    %v1123 = vadd.f32 %v1019, %v669
    %v1124 = vadd.f32 %v1020, %v698
    %v1125 = vadd.f32 %v1021, %v699
    %v1126 = vadd.f32 %v1022, %v700
    %v1127 = vadd.f32 %v1023, %v701
    %v1128 = vadd.f32 %v1024, %v702
    %v1129 = vadd.f32 %v1025, %v703
    %v1130 = vadd.f32 %v1026, %v704
    %v1131 = vadd.f32 %v1027, %v705
    %v1132 = vadd.f32 %v1028, %v706
    %v1133 = vadd.f32 %v1029, %v707
    %v1134 = vadd.f32 %v1030, %v708
    %v1135 = vadd.f32 %v1031, %v709
    %v1136 = vadd.f32 %v1032, %v710
    %v1137 = vadd.f32 %v1033, %v711
    %v1138 = vadd.f32 %v1034, %v712
    %v1139 = vadd.f32 %v1035, %v713
    %v1140 = vadd.f32 %v1036, %v714
    %v1141 = vadd.f32 %v1037, %v715
    %v1142 = vadd.f32 %v1038, %v716
    %v1143 = vadd.f32 %v1039, %v717
    %v1144 = vadd.f32 %v1040, %v718
    %v1145 = vadd.f32 %v1041, %v719
    %v1146 = vadd.f32 %v1042, %v720
    %v1147 = vadd.f32 %v1043, %v721
    %v1148 = vadd.f32 %v1044, %v722
    %v1149 = vadd.f32 %v1045, %v723
    %v1150 = vadd.f32 %v1046, %v753
    %v1151 = vadd.f32 %v1047, %v754
    %v1152 = vadd.f32 %v1048, %v755
    %v1153 = vadd.f32 %v1049, %v756
    %v1154 = vadd.f32 %v1050, %v757
    %v1155 = vadd.f32 %v1051, %v758
    %v1156 = vadd.f32 %v1052, %v759
    %v1157 = vadd.f32 %v1053, %v760
    %v1158 = vadd.f32 %v1054, %v761
    %v1159 = vadd.f32 %v1055, %v762
    %v1160 = vadd.f32 %v1056, %v763
    %v1161 = vadd.f32 %v1057, %v764
    %v1162 = vadd.f32 %v1058, %v765
    %v1163 = vadd.f32 %v1059, %v766
    %v1164 = vadd.f32 %v1060, %v767
    %v1165 = vadd.f32 %v1061, %v768
    %v1166 = vadd.f32 %v1062, %v769
    %v1167 = vadd.f32 %v1063, %v770
    %v1168 = vadd.f32 %v1064, %v771
    %v1169 = vadd.f32 %v1065, %v772
    %v1170 = vadd.f32 %v1066, %v773
    %v1171 = vadd.f32 %v1067, %v774
    %v1172 = vadd.f32 %v1068, %v775
    %v1173 = vadd.f32 %v1069, %v776
    %v1174 = vadd.f32 %v1070, %v777
    %v1175 = vadd.f32 %v1071, %v778
    %v1176 = vadd.f32 %v1072, %v807
    %v1177 = vadd.f32 %v1073, %v808
    %v1178 = vadd.f32 %v1074, %v809
    %v1179 = vadd.f32 %v1075, %v810
    %v1180 = vadd.f32 %v1076, %v811
    %v1181 = vadd.f32 %v1077, %v812
    %v1182 = vadd.f32 %v1078, %v813
    %v1183 = vadd.f32 %v1079, %v814
    %v1184 = vadd.f32 %v1080, %v815
    %v1185 = vadd.f32 %v1081, %v816
    %v1186 = vadd.f32 %v1082, %v817
    %v1187 = vadd.f32 %v1083, %v818
    %v1188 = vadd.f32 %v1084, %v819
    %v1189 = vadd.f32 %v1085, %v820
    %v1190 = vadd.f32 %v1086, %v821
    %v1191 = vadd.f32 %v1087, %v822
    %v1192 = vadd.f32 %v1088, %v823
    %v1193 = vadd.f32 %v1089, %v824
    %v1194 = vadd.f32 %v1090, %v825
    %v1195 = vadd.f32 %v1091, %v826
    %v1196 = vadd.f32 %v1092, %v827
    %v1197 = vadd.f32 %v1093, %v828
    %v1198 = vadd.f32 %v1094, %v829
    %v1199 = vadd.f32 %v1095, %v830
    %v1200 = vadd.f32 %v1096, %v831
    %v1201 = vadd.f32 %v1097, %v832
    %v1202 = vadd.f32 %v1098, %v862
    %v1203 = vadd.f32 %v1099, %v863
    %v1204 = vadd.f32 %v1100, %v864
    %v1205 = vadd.f32 %v1101, %v865
    %v1206 = vadd.f32 %v1102, %v866
    %v1207 = vadd.f32 %v1103, %v867
    %v1208 = vadd.f32 %v1104, %v868
    %v1209 = vadd.f32 %v1105, %v869
    %v1210 = vadd.f32 %v1106, %v870
    %v1211 = vadd.f32 %v1107, %v871
    %v1212 = vadd.f32 %v1108, %v872
    %v1213 = vadd.f32 %v1109, %v873
    %v1214 = vadd.f32 %v1110, %v874
    %v1215 = vadd.f32 %v1111, %v875
    %v1216 = vadd.f32 %v1112, %v876
    %v1217 = vadd.f32 %v1113, %v877
    %v1218 = vadd.f32 %v1114, %v878
    %v1219 = vadd.f32 %v1115, %v879
    %v1220 = vadd.f32 %v1116, %v880
    %v1221 = vadd.f32 %v1117, %v881
    %v1222 = vadd.f32 %v1118, %v882
    %v1223 = vadd.f32 %v1119, %v883
    %v1224 = vadd.f32 %v1120, %v884
    %v1225 = vadd.f32 %v1121, %v885
    %v1226 = vadd.f32 %v1122, %v886
    %v1227 = vadd.f32 %v1123, %v887
    %v1228 = vadd.f32 %v1124, %v916
    %v1229 = vadd.f32 %v1125, %v917
    %v1230 = vadd.f32 %v1126, %v918
    %v1231 = vadd.f32 %v1127, %v919
    %v1232 = vadd.f32 %v1128, %v920
    %v1233 = vadd.f32 %v1129, %v921
    %v1234 = vadd.f32 %v1130, %v922
    %v1235 = vadd.f32 %v1131, %v923
    %v1236 = vadd.f32 %v1132, %v924
    %v1237 = vadd.f32 %v1133, %v925
    %v1238 = vadd.f32 %v1134, %v926
    %v1239 = vadd.f32 %v1135, %v927
    %v1240 = vadd.f32 %v1136, %v928
    %v1241 = vadd.f32 %v1137, %v929
    %v1242 = vadd.f32 %v1138, %v930
    %v1243 = vadd.f32 %v1139, %v931
    %v1244 = vadd.f32 %v1140, %v932
    %v1245 = vadd.f32 %v1141, %v933
    %v1246 = vadd.f32 %v1142, %v934
    %v1247 = vadd.f32 %v1143, %v935
    %v1248 = vadd.f32 %v1144, %v936
    %v1249 = vadd.f32 %v1145, %v937
    %v1250 = vadd.f32 %v1146, %v938
    %v1251 = vadd.f32 %v1147, %v939
    %v1252 = vadd.f32 %v1148, %v940
    %v1253 = vadd.f32 %v1149, %v941
    %v1254 = vadd.f32 %v1150, %v1176
    %v1255 = vadd.f32 %v1151, %v1177
    %v1256 = vadd.f32 %v1152, %v1178
    %v1257 = vadd.f32 %v1153, %v1179
    %v1258 = vadd.f32 %v1154, %v1180
    %v1259 = vadd.f32 %v1155, %v1181
    %v1260 = vadd.f32 %v1156, %v1182
    %v1261 = vadd.f32 %v1157, %v1183
    %v1262 = vadd.f32 %v1158, %v1184
    %v1263 = vadd.f32 %v1159, %v1185
    %v1264 = vadd.f32 %v1160, %v1186
    %v1265 = vadd.f32 %v1161, %v1187
    %v1266 = vadd.f32 %v1162, %v1188
    %v1267 = vadd.f32 %v1163, %v1189
    %v1268 = vadd.f32 %v1164, %v1190
    %v1269 = vadd.f32 %v1165, %v1191
    %v1270 = vadd.f32 %v1166, %v1192
    %v1271 = vadd.f32 %v1167, %v1193
    %v1272 = vadd.f32 %v1168, %v1194
    %v1273 = vadd.f32 %v1169, %v1195
    %v1274 = vadd.f32 %v1170, %v1196
    %v1275 = vadd.f32 %v1171, %v1197
    %v1276 = vadd.f32 %v1172, %v1198
    %v1277 = vadd.f32 %v1173, %v1199
    %v1278 = vadd.f32 %v1174, %v1200
    %v1279 = vadd.f32 %v1175, %v1201
    %v1280 = vadd.f32 %v1254, %v1202
    %v1281 = vadd.f32 %v1255, %v1203
    %v1282 = vadd.f32 %v1256, %v1204
    %v1283 = vadd.f32 %v1257, %v1205
    %v1284 = vadd.f32 %v1258, %v1206
    %v1285 = vadd.f32 %v1259, %v1207
    %v1286 = vadd.f32 %v1260, %v1208
    %v1287 = vadd.f32 %v1261, %v1209
    %v1288 = vadd.f32 %v1262, %v1210
    %v1289 = vadd.f32 %v1263, %v1211
    %v1290 = vadd.f32 %v1264, %v1212
    %v1291 = vadd.f32 %v1265, %v1213
    %v1292 = vadd.f32 %v1266, %v1214
    %v1293 = vadd.f32 %v1267, %v1215
    %v1294 = vadd.f32 %v1268, %v1216
    %v1295 = vadd.f32 %v1269, %v1217
    %v1296 = vadd.f32 %v1270, %v1218
    %v1297 = vadd.f32 %v1271, %v1219
    %v1298 = vadd.f32 %v1272, %v1220
    %v1299 = vadd.f32 %v1273, %v1221
    %v1300 = vadd.f32 %v1274, %v1222
    %v1301 = vadd.f32 %v1275, %v1223
    %v1302 = vadd.f32 %v1276, %v1224
    %v1303 = vadd.f32 %v1277, %v1225
    %v1304 = vadd.f32 %v1278, %v1226
    %v1305 = vadd.f32 %v1279, %v1227
    %v1306 = vadd.f32 %v1280, %v1228
    %v1307 = vadd.f32 %v1281, %v1229
    %v1308 = vadd.f32 %v1282, %v1230
    %v1309 = vadd.f32 %v1283, %v1231
    %v1310 = vadd.f32 %v1284, %v1232
    %v1311 = vadd.f32 %v1285, %v1233
    %v1312 = vadd.f32 %v1286, %v1234
    %v1313 = vadd.f32 %v1287, %v1235
    %v1314 = vadd.f32 %v1288, %v1236
    %v1315 = vadd.f32 %v1289, %v1237
    %v1316 = vadd.f32 %v1290, %v1238
    %v1317 = vadd.f32 %v1291, %v1239
    %v1318 = vadd.f32 %v1292, %v1240
    %v1319 = vadd.f32 %v1293, %v1241
    %v1320 = vadd.f32 %v1294, %v1242
    %v1321 = vadd.f32 %v1295, %v1243
    %v1322 = vadd.f32 %v1296, %v1244
    %v1323 = vadd.f32 %v1297, %v1245
    %v1324 = vadd.f32 %v1298, %v1246
    %v1325 = vadd.f32 %v1299, %v1247
    %v1326 = vadd.f32 %v1300, %v1248
    %v1327 = vadd.f32 %v1301, %v1249
    %v1328 = vadd.f32 %v1302, %v1250
    %v1329 = vadd.f32 %v1303, %v1251
    %v1330 = vadd.f32 %v1304, %v1252
    %v1331 = vadd.f32 %v1305, %v1253
    %s1332 = sld [smem:[#allocation8]]
    %v1333 = vstv %s1332
    %v1334 = vmul.f32 %v1306, %v1333
    %v1335 = vmul.f32 %v1307, %v1333
    %v1336 = vmul.f32 %v1308, %v1333
    %v1337 = vmul.f32 %v1309, %v1333
    %v1338 = vmul.f32 %v1310, %v1333
    %v1339 = vmul.f32 %v1311, %v1333
    %v1340 = vmul.f32 %v1312, %v1333
    %v1341 = vmul.f32 %v1313, %v1333
    %v1342 = vmul.f32 %v1314, %v1333
    %v1343 = vmul.f32 %v1315, %v1333
    %v1344 = vmul.f32 %v1316, %v1333
    %v1345 = vmul.f32 %v1317, %v1333
    %v1346 = vmul.f32 %v1318, %v1333
    %v1347 = vmul.f32 %v1319, %v1333
    %v1348 = vmul.f32 %v1320, %v1333
    %v1349 = vmul.f32 %v1321, %v1333
    %v1350 = vmul.f32 %v1322, %v1333
    %v1351 = vmul.f32 %v1323, %v1333
    %v1352 = vmul.f32 %v1324, %v1333
    %v1353 = vmul.f32 %v1325, %v1333
    %s1354 = sld [smem:[#allocation8 + $0x1]]
    %v1355 = vstv %s1354
    %v1356 = vmul.f32 %v1306, %v1355
    %v1357 = vmul.f32 %v1307, %v1355
    %v1358 = vmul.f32 %v1308, %v1355
    %v1359 = vmul.f32 %v1309, %v1355
    %v1360 = vmul.f32 %v1310, %v1355
    %v1361 = vmul.f32 %v1311, %v1355
    %v1362 = vmul.f32 %v1312, %v1355
    %v1363 = vmul.f32 %v1313, %v1355
    %v1364 = vmul.f32 %v1314, %v1355
    %v1365 = vmul.f32 %v1315, %v1355
    %v1366 = vmul.f32 %v1316, %v1355
    %v1367 = vmul.f32 %v1317, %v1355
    %v1368 = vmul.f32 %v1318, %v1355
    %v1369 = vmul.f32 %v1319, %v1355
    %v1370 = vmul.f32 %v1320, %v1355
    %v1371 = vmul.f32 %v1321, %v1355
    %v1372 = vmul.f32 %v1322, %v1355
    %v1373 = vmul.f32 %v1323, %v1355
    %v1374 = vmul.f32 %v1324, %v1355
    %v1375 = vmul.f32 %v1325, %v1355
    %s1376 = sld [smem:[#allocation8 + $0x2]]
    %v1377 = vstv %s1376
    %v1378 = vmul.f32 %v1312, %v1377
    %v1379 = vmul.f32 %v1313, %v1377
    %v1380 = vmul.f32 %v1314, %v1377
    %v1381 = vmul.f32 %v1315, %v1377
    %v1382 = vmul.f32 %v1316, %v1377
    %v1383 = vmul.f32 %v1317, %v1377
    %v1384 = vmul.f32 %v1318, %v1377
    %v1385 = vmul.f32 %v1319, %v1377
    %v1386 = vmul.f32 %v1320, %v1377
    %v1387 = vmul.f32 %v1321, %v1377
    %v1388 = vmul.f32 %v1322, %v1377
    %v1389 = vmul.f32 %v1323, %v1377
    %v1390 = vmul.f32 %v1324, %v1377
    %v1391 = vmul.f32 %v1325, %v1377
    %v1392 = vmul.f32 %v1326, %v1377
    %v1393 = vmul.f32 %v1327, %v1377
    %v1394 = vmul.f32 %v1328, %v1377
    %v1395 = vmul.f32 %v1329, %v1377
    %v1396 = vmul.f32 %v1330, %v1377
    %v1397 = vmul.f32 %v1331, %v1377
    %s1398 = sld [smem:[#allocation8 + $0x3]]
    %v1399 = vstv %s1398
    %v1400 = vmul.f32 %v1312, %v1399
    %v1401 = vmul.f32 %v1313, %v1399
    %v1402 = vmul.f32 %v1314, %v1399
    %v1403 = vmul.f32 %v1315, %v1399
    %v1404 = vmul.f32 %v1316, %v1399
    %v1405 = vmul.f32 %v1317, %v1399
    %v1406 = vmul.f32 %v1318, %v1399
    %v1407 = vmul.f32 %v1319, %v1399
    %v1408 = vmul.f32 %v1320, %v1399
    %v1409 = vmul.f32 %v1321, %v1399
    %v1410 = vmul.f32 %v1322, %v1399
    %v1411 = vmul.f32 %v1323, %v1399
    %v1412 = vmul.f32 %v1324, %v1399
    %v1413 = vmul.f32 %v1325, %v1399
    %v1414 = vmul.f32 %v1326, %v1399
    %v1415 = vmul.f32 %v1327, %v1399
    %v1416 = vmul.f32 %v1328, %v1399
    %v1417 = vmul.f32 %v1329, %v1399
    %v1418 = vmul.f32 %v1330, %v1399
    %v1419 = vmul.f32 %v1331, %v1399
    %vm1440 = vcmask 1044480
    %v1441 = vrot.slane %v1356, 3
    %v1442 = vrot.slane %v1357, 3
    %v1443 = vsel %vm1440, %v1441, %v1442
    %v1444 = vrot.slane %v1358, 3
    %v1445 = vrot.slane %v1359, 3
    %v1446 = vsel %vm1440, %v1444, %v1445
    %v1447 = vrot.slane %v1360, 3
    %v1448 = vrot.slane %v1361, 3
    %v1449 = vsel %vm1440, %v1447, %v1448
    %v1450 = vrot.slane %v1362, 3
    %v1451 = vrot.slane %v1363, 3
    %v1452 = vsel %vm1440, %v1450, %v1451
    %v1453 = vrot.slane %v1364, 3
    %v1454 = vrot.slane %v1365, 3
    %v1455 = vsel %vm1440, %v1453, %v1454
    %v1456 = vrot.slane %v1366, 3
    %v1457 = vrot.slane %v1367, 3
    %v1458 = vsel %vm1440, %v1456, %v1457
    %v1459 = vrot.slane %v1368, 3
    %v1460 = vrot.slane %v1369, 3
    %v1461 = vsel %vm1440, %v1459, %v1460
    %v1462 = vrot.slane %v1370, 3
    %v1463 = vrot.slane %v1371, 3
    %v1464 = vsel %vm1440, %v1462, %v1463
    %v1465 = vrot.slane %v1372, 3
    %v1466 = vrot.slane %v1373, 3
    %v1467 = vsel %vm1440, %v1465, %v1466
    %v1468 = vrot.slane %v1374, 3
    %v1469 = vrot.slane %v1375, 3
    %v1470 = vsel %vm1440, %v1468, %v1469
    %v1491 = vadd.f32 %v1334, %v1443
    %v1492 = vadd.f32 %v1335, %v1442
    %v1493 = vadd.f32 %v1336, %v1446
    %v1494 = vadd.f32 %v1337, %v1445
    %v1495 = vadd.f32 %v1338, %v1449
    %v1496 = vadd.f32 %v1339, %v1448
    %v1497 = vadd.f32 %v1340, %v1452
    %v1498 = vadd.f32 %v1341, %v1451
    %v1499 = vadd.f32 %v1342, %v1455
    %v1500 = vadd.f32 %v1343, %v1454
    %v1501 = vadd.f32 %v1344, %v1458
    %v1502 = vadd.f32 %v1345, %v1457
    %v1503 = vadd.f32 %v1346, %v1461
    %v1504 = vadd.f32 %v1347, %v1460
    %v1505 = vadd.f32 %v1348, %v1464
    %v1506 = vadd.f32 %v1349, %v1463
    %v1507 = vadd.f32 %v1350, %v1467
    %v1508 = vadd.f32 %v1351, %v1466
    %v1509 = vadd.f32 %v1352, %v1470
    %v1510 = vadd.f32 %v1353, %v1469
    %v1511 = vadd.f32 %v1491, %v1378
    %v1512 = vadd.f32 %v1492, %v1379
    %v1513 = vadd.f32 %v1493, %v1380
    %v1514 = vadd.f32 %v1494, %v1381
    %v1515 = vadd.f32 %v1495, %v1382
    %v1516 = vadd.f32 %v1496, %v1383
    %v1517 = vadd.f32 %v1497, %v1384
    %v1518 = vadd.f32 %v1498, %v1385
    %v1519 = vadd.f32 %v1499, %v1386
    %v1520 = vadd.f32 %v1500, %v1387
    %v1521 = vadd.f32 %v1501, %v1388
    %v1522 = vadd.f32 %v1502, %v1389
    %v1523 = vadd.f32 %v1503, %v1390
    %v1524 = vadd.f32 %v1504, %v1391
    %v1525 = vadd.f32 %v1505, %v1392
    %v1526 = vadd.f32 %v1506, %v1393
    %v1527 = vadd.f32 %v1507, %v1394
    %v1528 = vadd.f32 %v1508, %v1395
    %v1529 = vadd.f32 %v1509, %v1396
    %v1530 = vadd.f32 %v1510, %v1397
    %v1551 = vrot.slane %v1400, 3
    %v1552 = vrot.slane %v1401, 3
    %v1553 = vsel %vm1440, %v1551, %v1552
    %v1554 = vrot.slane %v1402, 3
    %v1555 = vrot.slane %v1403, 3
    %v1556 = vsel %vm1440, %v1554, %v1555
    %v1557 = vrot.slane %v1404, 3
    %v1558 = vrot.slane %v1405, 3
    %v1559 = vsel %vm1440, %v1557, %v1558
    %v1560 = vrot.slane %v1406, 3
    %v1561 = vrot.slane %v1407, 3
    %v1562 = vsel %vm1440, %v1560, %v1561
    %v1563 = vrot.slane %v1408, 3
    %v1564 = vrot.slane %v1409, 3
    %v1565 = vsel %vm1440, %v1563, %v1564
    %v1566 = vrot.slane %v1410, 3
    %v1567 = vrot.slane %v1411, 3
    %v1568 = vsel %vm1440, %v1566, %v1567
    %v1569 = vrot.slane %v1412, 3
    %v1570 = vrot.slane %v1413, 3
    %v1571 = vsel %vm1440, %v1569, %v1570
    %v1572 = vrot.slane %v1414, 3
    %v1573 = vrot.slane %v1415, 3
    %v1574 = vsel %vm1440, %v1572, %v1573
    %v1575 = vrot.slane %v1416, 3
    %v1576 = vrot.slane %v1417, 3
    %v1577 = vsel %vm1440, %v1575, %v1576
    %v1578 = vrot.slane %v1418, 3
    %v1579 = vrot.slane %v1419, 3
    %v1580 = vsel %vm1440, %v1578, %v1579
    %v1601 = vadd.f32 %v1511, %v1553
    %v1602 = vadd.f32 %v1512, %v1552
    %v1603 = vadd.f32 %v1513, %v1556
    %v1604 = vadd.f32 %v1514, %v1555
    %v1605 = vadd.f32 %v1515, %v1559
    %v1606 = vadd.f32 %v1516, %v1558
    %v1607 = vadd.f32 %v1517, %v1562
    %v1608 = vadd.f32 %v1518, %v1561
    %v1609 = vadd.f32 %v1519, %v1565
    %v1610 = vadd.f32 %v1520, %v1564
    %v1611 = vadd.f32 %v1521, %v1568
    %v1612 = vadd.f32 %v1522, %v1567
    %v1613 = vadd.f32 %v1523, %v1571
    %v1614 = vadd.f32 %v1524, %v1570
    %v1615 = vadd.f32 %v1525, %v1574
    %v1616 = vadd.f32 %v1526, %v1573
    %v1617 = vadd.f32 %v1527, %v1577
    %v1618 = vadd.f32 %v1528, %v1576
    %v1619 = vadd.f32 %v1529, %v1580
    %v1620 = vadd.f32 %v1530, %v1579
    %s1621 = sld [smem:[#allocation9]]
    %v1622 = vstv %s1621
    %v1623 = vmul.f32 %v1601, %v1622
    %v1624 = vmul.f32 %v1603, %v1622
    %v1625 = vmul.f32 %v1605, %v1622
    %v1626 = vmul.f32 %v1607, %v1622
    %v1627 = vmul.f32 %v1609, %v1622
    %v1628 = vmul.f32 %v1611, %v1622
    %v1629 = vmul.f32 %v1613, %v1622
    %s1630 = sld [smem:[#allocation9 + $0x1]]
    %v1631 = vstv %s1630
    %v1632 = vmul.f32 %v1601, %v1631
    %v1633 = vmul.f32 %v1603, %v1631
    %v1634 = vmul.f32 %v1605, %v1631
    %v1635 = vmul.f32 %v1607, %v1631
    %v1636 = vmul.f32 %v1609, %v1631
    %v1637 = vmul.f32 %v1611, %v1631
    %v1638 = vmul.f32 %v1613, %v1631
    %s1639 = sld [smem:[#allocation9 + $0x2]]
    %v1640 = vstv %s1639
    %v1641 = vmul.f32 %v1601, %v1640
    %v1642 = vmul.f32 %v1602, %v1640
    %v1643 = vmul.f32 %v1603, %v1640
    %v1644 = vmul.f32 %v1604, %v1640
    %v1645 = vmul.f32 %v1605, %v1640
    %v1646 = vmul.f32 %v1606, %v1640
    %v1647 = vmul.f32 %v1607, %v1640
    %v1648 = vmul.f32 %v1608, %v1640
    %v1649 = vmul.f32 %v1609, %v1640
    %v1650 = vmul.f32 %v1610, %v1640
    %v1651 = vmul.f32 %v1611, %v1640
    %v1652 = vmul.f32 %v1612, %v1640
    %v1653 = vmul.f32 %v1613, %v1640
    %v1654 = vmul.f32 %v1614, %v1640
    %s1655 = sld [smem:[#allocation9 + $0x3]]
    %v1656 = vstv %s1655
    %v1657 = vmul.f32 %v1601, %v1656
    %v1658 = vmul.f32 %v1602, %v1656
    %v1659 = vmul.f32 %v1603, %v1656
    %v1660 = vmul.f32 %v1604, %v1656
    %v1661 = vmul.f32 %v1605, %v1656
    %v1662 = vmul.f32 %v1606, %v1656
    %v1663 = vmul.f32 %v1607, %v1656
    %v1664 = vmul.f32 %v1608, %v1656
    %v1665 = vmul.f32 %v1609, %v1656
    %v1666 = vmul.f32 %v1610, %v1656
    %v1667 = vmul.f32 %v1611, %v1656
    %v1668 = vmul.f32 %v1612, %v1656
    %v1669 = vmul.f32 %v1613, %v1656
    %v1670 = vmul.f32 %v1614, %v1656
    %s1671 = sld [smem:[#allocation9 + $0x4]]
    %v1672 = vstv %s1671
    %v1673 = vmul.f32 %v1603, %v1672
    %v1674 = vmul.f32 %v1605, %v1672
    %v1675 = vmul.f32 %v1607, %v1672
    %v1676 = vmul.f32 %v1609, %v1672
    %v1677 = vmul.f32 %v1611, %v1672
    %v1678 = vmul.f32 %v1613, %v1672
    %v1679 = vmul.f32 %v1615, %v1672
    %s1680 = sld [smem:[#allocation9 + $0x5]]
    %v1681 = vstv %s1680
    %v1682 = vmul.f32 %v1603, %v1681
    %v1683 = vmul.f32 %v1605, %v1681
    %v1684 = vmul.f32 %v1607, %v1681
    %v1685 = vmul.f32 %v1609, %v1681
    %v1686 = vmul.f32 %v1611, %v1681
    %v1687 = vmul.f32 %v1613, %v1681
    %v1688 = vmul.f32 %v1615, %v1681
    %s1689 = sld [smem:[#allocation9 + $0x6]]
    %v1690 = vstv %s1689
    %v1691 = vmul.f32 %v1603, %v1690
    %v1692 = vmul.f32 %v1604, %v1690
    %v1693 = vmul.f32 %v1605, %v1690
    %v1694 = vmul.f32 %v1606, %v1690
    %v1695 = vmul.f32 %v1607, %v1690
    %v1696 = vmul.f32 %v1608, %v1690
    %v1697 = vmul.f32 %v1609, %v1690
    %v1698 = vmul.f32 %v1610, %v1690
    %v1699 = vmul.f32 %v1611, %v1690
    %v1700 = vmul.f32 %v1612, %v1690
    %v1701 = vmul.f32 %v1613, %v1690
    %v1702 = vmul.f32 %v1614, %v1690
    %v1703 = vmul.f32 %v1615, %v1690
    %v1704 = vmul.f32 %v1616, %v1690
    %s1705 = sld [smem:[#allocation9 + $0x7]]
    %v1706 = vstv %s1705
    %v1707 = vmul.f32 %v1603, %v1706
    %v1708 = vmul.f32 %v1604, %v1706
    %v1709 = vmul.f32 %v1605, %v1706
    %v1710 = vmul.f32 %v1606, %v1706
    %v1711 = vmul.f32 %v1607, %v1706
    %v1712 = vmul.f32 %v1608, %v1706
    %v1713 = vmul.f32 %v1609, %v1706
    %v1714 = vmul.f32 %v1610, %v1706
    %v1715 = vmul.f32 %v1611, %v1706
    %v1716 = vmul.f32 %v1612, %v1706
    %v1717 = vmul.f32 %v1613, %v1706
    %v1718 = vmul.f32 %v1614, %v1706
    %v1719 = vmul.f32 %v1615, %v1706
    %v1720 = vmul.f32 %v1616, %v1706
    %s1721 = sld [smem:[#allocation9 + $0x8]]
    %v1722 = vstv %s1721
    %v1723 = vmul.f32 %v1605, %v1722
    %v1724 = vmul.f32 %v1607, %v1722
    %v1725 = vmul.f32 %v1609, %v1722
    %v1726 = vmul.f32 %v1611, %v1722
    %v1727 = vmul.f32 %v1613, %v1722
    %v1728 = vmul.f32 %v1615, %v1722
    %v1729 = vmul.f32 %v1617, %v1722
    %s1730 = sld [smem:[#allocation9 + $0x9]]
    %v1731 = vstv %s1730
    %v1732 = vmul.f32 %v1605, %v1731
    %v1733 = vmul.f32 %v1607, %v1731
    %v1734 = vmul.f32 %v1609, %v1731
    %v1735 = vmul.f32 %v1611, %v1731
    %v1736 = vmul.f32 %v1613, %v1731
    %v1737 = vmul.f32 %v1615, %v1731
    %v1738 = vmul.f32 %v1617, %v1731
    %s1739 = sld [smem:[#allocation9 + $0xa]]
    %v1740 = vstv %s1739
    %v1741 = vmul.f32 %v1605, %v1740
    %v1742 = vmul.f32 %v1606, %v1740
    %v1743 = vmul.f32 %v1607, %v1740
    %v1744 = vmul.f32 %v1608, %v1740
    %v1745 = vmul.f32 %v1609, %v1740
    %v1746 = vmul.f32 %v1610, %v1740
    %v1747 = vmul.f32 %v1611, %v1740
    %v1748 = vmul.f32 %v1612, %v1740
    %v1749 = vmul.f32 %v1613, %v1740
    %v1750 = vmul.f32 %v1614, %v1740
    %v1751 = vmul.f32 %v1615, %v1740
    %v1752 = vmul.f32 %v1616, %v1740
    %v1753 = vmul.f32 %v1617, %v1740
    %v1754 = vmul.f32 %v1618, %v1740
    %s1755 = sld [smem:[#allocation9 + $0xb]]
    %v1756 = vstv %s1755
    %v1757 = vmul.f32 %v1605, %v1756
    %v1758 = vmul.f32 %v1606, %v1756
    %v1759 = vmul.f32 %v1607, %v1756
    %v1760 = vmul.f32 %v1608, %v1756
    %v1761 = vmul.f32 %v1609, %v1756
    %v1762 = vmul.f32 %v1610, %v1756
    %v1763 = vmul.f32 %v1611, %v1756
    %v1764 = vmul.f32 %v1612, %v1756
    %v1765 = vmul.f32 %v1613, %v1756
    %v1766 = vmul.f32 %v1614, %v1756
    %v1767 = vmul.f32 %v1615, %v1756
    %v1768 = vmul.f32 %v1616, %v1756
    %v1769 = vmul.f32 %v1617, %v1756
    %v1770 = vmul.f32 %v1618, %v1756
    %s1771 = sld [smem:[#allocation9 + $0xc]]
    %v1772 = vstv %s1771
    %v1773 = vmul.f32 %v1607, %v1772
    %v1774 = vmul.f32 %v1609, %v1772
    %v1775 = vmul.f32 %v1611, %v1772
    %v1776 = vmul.f32 %v1613, %v1772
    %v1777 = vmul.f32 %v1615, %v1772
    %v1778 = vmul.f32 %v1617, %v1772
    %v1779 = vmul.f32 %v1619, %v1772
    %s1780 = sld [smem:[#allocation9 + $0xd]]
    %v1781 = vstv %s1780
    %v1782 = vmul.f32 %v1607, %v1781
    %v1783 = vmul.f32 %v1609, %v1781
    %v1784 = vmul.f32 %v1611, %v1781
    %v1785 = vmul.f32 %v1613, %v1781
    %v1786 = vmul.f32 %v1615, %v1781
    %v1787 = vmul.f32 %v1617, %v1781
    %v1788 = vmul.f32 %v1619, %v1781
    %s1789 = sld [smem:[#allocation9 + $0xe]]
    %v1790 = vstv %s1789
    %v1791 = vmul.f32 %v1607, %v1790
    %v1792 = vmul.f32 %v1608, %v1790
    %v1793 = vmul.f32 %v1609, %v1790
    %v1794 = vmul.f32 %v1610, %v1790
    %v1795 = vmul.f32 %v1611, %v1790
    %v1796 = vmul.f32 %v1612, %v1790
    %v1797 = vmul.f32 %v1613, %v1790
    %v1798 = vmul.f32 %v1614, %v1790
    %v1799 = vmul.f32 %v1615, %v1790
    %v1800 = vmul.f32 %v1616, %v1790
    %v1801 = vmul.f32 %v1617, %v1790
    %v1802 = vmul.f32 %v1618, %v1790
    %v1803 = vmul.f32 %v1619, %v1790
    %v1804 = vmul.f32 %v1620, %v1790
    %s1805 = sld [smem:[#allocation9 + $0xf]]
    %v1806 = vstv %s1805
    %v1807 = vmul.f32 %v1607, %v1806
    %v1808 = vmul.f32 %v1608, %v1806
    %v1809 = vmul.f32 %v1609, %v1806
    %v1810 = vmul.f32 %v1610, %v1806
    %v1811 = vmul.f32 %v1611, %v1806
    %v1812 = vmul.f32 %v1612, %v1806
    %v1813 = vmul.f32 %v1613, %v1806
    %v1814 = vmul.f32 %v1614, %v1806
    %v1815 = vmul.f32 %v1615, %v1806
    %v1816 = vmul.f32 %v1616, %v1806
    %v1817 = vmul.f32 %v1617, %v1806
    %v1818 = vmul.f32 %v1618, %v1806
    %v1819 = vmul.f32 %v1619, %v1806
    %v1820 = vmul.f32 %v1620, %v1806
    %v1821 = vadd.f32 %v1623, %v1673
    %v1822 = vadd.f32 %v1624, %v1674
    %v1823 = vadd.f32 %v1625, %v1675
    %v1824 = vadd.f32 %v1626, %v1676
    %v1825 = vadd.f32 %v1627, %v1677
    %v1826 = vadd.f32 %v1628, %v1678
    %v1827 = vadd.f32 %v1629, %v1679
    %v1828 = vadd.f32 %v1632, %v1682
    %v1829 = vadd.f32 %v1633, %v1683
    %v1830 = vadd.f32 %v1634, %v1684
    %v1831 = vadd.f32 %v1635, %v1685
    %v1832 = vadd.f32 %v1636, %v1686
    %v1833 = vadd.f32 %v1637, %v1687
    %v1834 = vadd.f32 %v1638, %v1688
    %v1835 = vadd.f32 %v1641, %v1691
    %v1836 = vadd.f32 %v1642, %v1692
    %v1837 = vadd.f32 %v1643, %v1693
    %v1838 = vadd.f32 %v1644, %v1694
    %v1839 = vadd.f32 %v1645, %v1695
    %v1840 = vadd.f32 %v1646, %v1696
    %v1841 = vadd.f32 %v1647, %v1697
    %v1842 = vadd.f32 %v1648, %v1698
    %v1843 = vadd.f32 %v1649, %v1699
    %v1844 = vadd.f32 %v1650, %v1700
    %v1845 = vadd.f32 %v1651, %v1701
    %v1846 = vadd.f32 %v1652, %v1702
    %v1847 = vadd.f32 %v1653, %v1703
    %v1848 = vadd.f32 %v1654, %v1704
    %v1849 = vadd.f32 %v1657, %v1707
    %v1850 = vadd.f32 %v1658, %v1708
    %v1851 = vadd.f32 %v1659, %v1709
    %v1852 = vadd.f32 %v1660, %v1710
    %v1853 = vadd.f32 %v1661, %v1711
    %v1854 = vadd.f32 %v1662, %v1712
    %v1855 = vadd.f32 %v1663, %v1713
    %v1856 = vadd.f32 %v1664, %v1714
    %v1857 = vadd.f32 %v1665, %v1715
    %v1858 = vadd.f32 %v1666, %v1716
    %v1859 = vadd.f32 %v1667, %v1717
    %v1860 = vadd.f32 %v1668, %v1718
    %v1861 = vadd.f32 %v1669, %v1719
    %v1862 = vadd.f32 %v1670, %v1720
    %v1863 = vadd.f32 %v1821, %v1723
    %v1864 = vadd.f32 %v1822, %v1724
    %v1865 = vadd.f32 %v1823, %v1725
    %v1866 = vadd.f32 %v1824, %v1726
    %v1867 = vadd.f32 %v1825, %v1727
    %v1868 = vadd.f32 %v1826, %v1728
    %v1869 = vadd.f32 %v1827, %v1729
    %v1870 = vadd.f32 %v1828, %v1732
    %v1871 = vadd.f32 %v1829, %v1733
    %v1872 = vadd.f32 %v1830, %v1734
    %v1873 = vadd.f32 %v1831, %v1735
    %v1874 = vadd.f32 %v1832, %v1736
    %v1875 = vadd.f32 %v1833, %v1737
    %v1876 = vadd.f32 %v1834, %v1738
    %v1877 = vadd.f32 %v1835, %v1741
    %v1878 = vadd.f32 %v1836, %v1742
    %v1879 = vadd.f32 %v1837, %v1743
    %v1880 = vadd.f32 %v1838, %v1744
    %v1881 = vadd.f32 %v1839, %v1745
    %v1882 = vadd.f32 %v1840, %v1746
    %v1883 = vadd.f32 %v1841, %v1747
    %v1884 = vadd.f32 %v1842, %v1748
    %v1885 = vadd.f32 %v1843, %v1749
    %v1886 = vadd.f32 %v1844, %v1750
    %v1887 = vadd.f32 %v1845, %v1751
    %v1888 = vadd.f32 %v1846, %v1752
    %v1889 = vadd.f32 %v1847, %v1753
    %v1890 = vadd.f32 %v1848, %v1754
    %v1891 = vadd.f32 %v1849, %v1757
    %v1892 = vadd.f32 %v1850, %v1758
    %v1893 = vadd.f32 %v1851, %v1759
    %v1894 = vadd.f32 %v1852, %v1760
    %v1895 = vadd.f32 %v1853, %v1761
    %v1896 = vadd.f32 %v1854, %v1762
    %v1897 = vadd.f32 %v1855, %v1763
    %v1898 = vadd.f32 %v1856, %v1764
    %v1899 = vadd.f32 %v1857, %v1765
    %v1900 = vadd.f32 %v1858, %v1766
    %v1901 = vadd.f32 %v1859, %v1767
    %v1902 = vadd.f32 %v1860, %v1768
    %v1903 = vadd.f32 %v1861, %v1769
    %v1904 = vadd.f32 %v1862, %v1770
    %v1905 = vadd.f32 %v1863, %v1773
    %v1906 = vadd.f32 %v1864, %v1774
    %v1907 = vadd.f32 %v1865, %v1775
    %v1908 = vadd.f32 %v1866, %v1776
    %v1909 = vadd.f32 %v1867, %v1777
    %v1910 = vadd.f32 %v1868, %v1778
    %v1911 = vadd.f32 %v1869, %v1779
    %v1912 = vadd.f32 %v1870, %v1782
    %v1913 = vadd.f32 %v1871, %v1783
    %v1914 = vadd.f32 %v1872, %v1784
    %v1915 = vadd.f32 %v1873, %v1785
    %v1916 = vadd.f32 %v1874, %v1786
    %v1917 = vadd.f32 %v1875, %v1787
    %v1918 = vadd.f32 %v1876, %v1788
    %v1919 = vadd.f32 %v1877, %v1791
    %v1920 = vadd.f32 %v1878, %v1792
    %v1921 = vadd.f32 %v1879, %v1793
    %v1922 = vadd.f32 %v1880, %v1794
    %v1923 = vadd.f32 %v1881, %v1795
    %v1924 = vadd.f32 %v1882, %v1796
    %v1925 = vadd.f32 %v1883, %v1797
    %v1926 = vadd.f32 %v1884, %v1798
    %v1927 = vadd.f32 %v1885, %v1799
    %v1928 = vadd.f32 %v1886, %v1800
    %v1929 = vadd.f32 %v1887, %v1801
    %v1930 = vadd.f32 %v1888, %v1802
    %v1931 = vadd.f32 %v1889, %v1803
    %v1932 = vadd.f32 %v1890, %v1804
    %v1933 = vadd.f32 %v1891, %v1807
    %v1934 = vadd.f32 %v1892, %v1808
    %v1935 = vadd.f32 %v1893, %v1809
    %v1936 = vadd.f32 %v1894, %v1810
    %v1937 = vadd.f32 %v1895, %v1811
    %v1938 = vadd.f32 %v1896, %v1812
    %v1939 = vadd.f32 %v1897, %v1813
    %v1940 = vadd.f32 %v1898, %v1814
    %v1941 = vadd.f32 %v1899, %v1815
    %v1942 = vadd.f32 %v1900, %v1816
    %v1943 = vadd.f32 %v1901, %v1817
    %v1944 = vadd.f32 %v1902, %v1818
    %v1945 = vadd.f32 %v1903, %v1819
    %v1946 = vadd.f32 %v1904, %v1820
    %v1954 = vrot.slane %v1912, 1
    %v1955 = vrot.slane %v1913, 1
    %v1956 = vrot.slane %v1914, 1
    %v1957 = vrot.slane %v1915, 1
    %v1958 = vrot.slane %v1916, 1
    %v1959 = vrot.slane %v1917, 1
    %v1960 = vrot.slane %v1918, 1
    %v1968 = vadd.f32 %v1905, %v1954
    %v1969 = vadd.f32 %v1906, %v1955
    %v1970 = vadd.f32 %v1907, %v1956
    %v1971 = vadd.f32 %v1908, %v1957
    %v1972 = vadd.f32 %v1909, %v1958
    %v1973 = vadd.f32 %v1910, %v1959
    %v1974 = vadd.f32 %v1911, %v1960
    %vm1989 = vcmask 1045504
    %v1990 = vrot.slane %v1919, 2
    %v1991 = vrot.slane %v1920, 2
    %v1992 = vsel %vm1989, %v1990, %v1991
    %v1993 = vrot.slane %v1921, 2
    %v1994 = vrot.slane %v1922, 2
    %v1995 = vsel %vm1989, %v1993, %v1994
    %v1996 = vrot.slane %v1923, 2
    %v1997 = vrot.slane %v1924, 2
    %v1998 = vsel %vm1989, %v1996, %v1997
    %v1999 = vrot.slane %v1925, 2
    %v2000 = vrot.slane %v1926, 2
    %v2001 = vsel %vm1989, %v1999, %v2000
    %v2002 = vrot.slane %v1927, 2
    %v2003 = vrot.slane %v1928, 2
    %v2004 = vsel %vm1989, %v2002, %v2003
    %v2005 = vrot.slane %v1929, 2
    %v2006 = vrot.slane %v1930, 2
    %v2007 = vsel %vm1989, %v2005, %v2006
    %v2008 = vrot.slane %v1931, 2
    %v2009 = vrot.slane %v1932, 2
    %v2010 = vsel %vm1989, %v2008, %v2009
    %v2018 = vadd.f32 %v1968, %v1992
    %v2019 = vadd.f32 %v1969, %v1995
    %v2020 = vadd.f32 %v1970, %v1998
    %v2021 = vadd.f32 %v1971, %v2001
    %v2022 = vadd.f32 %v1972, %v2004
    %v2023 = vadd.f32 %v1973, %v2007
    %v2024 = vadd.f32 %v1974, %v2010
    %v2039 = vrot.slane %v1933, 3
    %v2040 = vrot.slane %v1934, 3
    %v2041 = vsel %vm1440, %v2039, %v2040
    %v2042 = vrot.slane %v1935, 3
    %v2043 = vrot.slane %v1936, 3
    %v2044 = vsel %vm1440, %v2042, %v2043
    %v2045 = vrot.slane %v1937, 3
    %v2046 = vrot.slane %v1938, 3
    %v2047 = vsel %vm1440, %v2045, %v2046
    %v2048 = vrot.slane %v1939, 3
    %v2049 = vrot.slane %v1940, 3
    %v2050 = vsel %vm1440, %v2048, %v2049
    %v2051 = vrot.slane %v1941, 3
    %v2052 = vrot.slane %v1942, 3
    %v2053 = vsel %vm1440, %v2051, %v2052
    %v2054 = vrot.slane %v1943, 3
    %v2055 = vrot.slane %v1944, 3
    %v2056 = vsel %vm1440, %v2054, %v2055
    %v2057 = vrot.slane %v1945, 3
    %v2058 = vrot.slane %v1946, 3
    %v2059 = vsel %vm1440, %v2057, %v2058
    %v2067 = vadd.f32 %v2018, %v2041
    %v2068 = vadd.f32 %v2019, %v2044
    %v2069 = vadd.f32 %v2020, %v2047
    %v2070 = vadd.f32 %v2021, %v2050
    %v2071 = vadd.f32 %v2022, %v2053
    %v2072 = vadd.f32 %v2023, %v2056
    %v2073 = vadd.f32 %v2024, %v2059
    %2074 = vst [vmem:[#allocation11] sm:$0x7f] %v2067
    %2075 = vst [vmem:[#allocation11 + $0x8] sm:$0x7f] %v2068
    %2076 = vst [vmem:[#allocation11 + $0x10] sm:$0x7f] %v2069
    %2077 = vst [vmem:[#allocation11 + $0x18] sm:$0x7f] %v2070
    %2078 = vst [vmem:[#allocation11 + $0x20] sm:$0x7f] %v2071
    %2079 = vst [vmem:[#allocation11 + $0x28] sm:$0x7f] %v2072
    %2080 = vst [vmem:[#allocation11 + $0x30] sm:$0x7f] %v2073
    // Predicated region
    $region34: #{tpu_custom_call.1} parent=1 // pred_check
      _
    $region35: #{tpu_custom_call.1} parent=1 // pred_check_branch
      %2082 = sbr.rel (0) target = $region37
    $region36: #{tpu_custom_call.1} parent=1 // pred_region
      %2084 = vsyncadd [#allocation4], 0
      %s2085 = sshll.u32 [#allocation11], 4
      %s2086 = int_to_ptr.vmem [resolvable:$true] %s2085
      %s2087 = sshll.u32 %s4, 4
      %s2088 = int_to_ptr.hbm [resolvable:$true] %s2087
      %2093 = dma.vmem_to_hbm [thread:$0]  %s2086, 896, %s2088, [#allocation4], 128, 128, 8
    $region37: #{tpu_custom_call.1} parent=1 // pred_fallthru
      _
    // Predicated region
    $region38: #{tpu_custom_call.1} parent=1 // pred_check
      _
    $region39: #{tpu_custom_call.1} parent=1 // pred_check_branch
      %2095 = sbr.rel (0) target = $region41
    $region40: #{tpu_custom_call.1} parent=1 // pred_region
      %2097 = dma.done [#allocation4], 896
    $region41: #{tpu_custom_call.1} parent=1 // pred_fallthru
      _
    %2098 = vsyncpa [#allocation3], 1
    %2099 = vsyncpa [#allocation4], 1
    %2100 = vsyncpa [#allocation5], 1
    %2101 = vsyncpa [#allocation6], 1
    %2102 = vsyncpa [#allocation10], 1

</llo_original>
